<compile_context>
chip_gen: v7x
topology: tpu7x:2x2x1
jax: 0.10.0
libtpu: 0.0.40
codegen_flags: <defaults>
</compile_context>

<pallas_src>
import functools

import jax
import jax.numpy as jnp
import numpy as np
from jax.experimental import pallas as pl
from jax.experimental.pallas import tpu as pltpu

T_ACT = 81   # number of Bezier samples (np.linspace(0, 1, 81))
T_PAD = 88   # sublane-padded sample count (multiple of 8)


def _bezier_kernel(cp_ref, pd_ref, out_ref):
    # cp_ref:  VMEM (8, BC)            rows = [x0, x1, x2, x3, y0, y1, y2, y3]
    # pd_ref:  VMEM (3, N_pad, 1, BC)  [0]=px, [1]=py, [2]=valid-point mask
    # out_ref: VMEM (1, BC)            per-curve loss
    cp = cp_ref[...]
    x0, x1, x2, x3 = cp[0:1], cp[1:2], cp[2:3], cp[3:4]          # (1, BC)
    y0, y1, y2, y3 = cp[4:5], cp[5:6], cp[6:7], cp[7:8]

    # Sample parameter on the sublane axis.  Padded rows (>= T_ACT) clamp to
    # the last sample, duplicating t=1, so they can never win the min below.
    row = jax.lax.broadcasted_iota(jnp.int32, (T_PAD, 1), 0)
    row = jnp.minimum(row, T_ACT - 1)
    t = row.astype(jnp.float32) * jnp.float32(1.0 / (T_ACT - 1))  # (T_PAD, 1)
    u = 1.0 - t

    # de Casteljau exactly as in the reference forward(), vectorized over
    # curves (lanes) and samples (sublanes); repeated middle lerp hoisted.
    m1x = u * x1 + t * x2                                        # (T_PAD, BC)
    m1y = u * y1 + t * y2
    bez_x = (u * (u * (u * x0 + t * x1) + t * m1x)
             + t * (u * m1x + t * (u * x2 + t * x3)))
    bez_y = (u * (u * (u * y0 + t * y1) + t * m1y)
             + t * (u * m1y + t * (u * y2 + t * y3)))

    pd = pd_ref[...]
    px, py, msk = pd[0], pd[1], pd[2]                            # (N_pad, 1, BC)

    dx = bez_x - px                                              # (N_pad, T_PAD, BC)
    dy = bez_y - py
    d2 = dx * dx + dy * dy

    # Min over the samples (sublane axis); one sqrt per (point, curve);
    # padded points / padded curves contribute 0 via the mask.
    min_d = jnp.sqrt(jnp.min(d2, axis=1, keepdims=True))         # (N_pad, 1, BC)
    out_ref[...] = jnp.sum(min_d * msk, axis=0)                  # (1, BC)


@functools.partial(jax.jit, static_argnames=("bc",))
def _bezier_pallas(cp, pd, *, bc):
    """cp: (8, B_pad) f32, pd: (3, N_pad, 1, B_pad) f32 -> (B_pad,) f32 losses."""
    _, b_pad = cp.shape
    _, n_pad, _, _ = pd.shape
    num_blocks = b_pad // bc
    out = pl.pallas_call(
        _bezier_kernel,
        out_shape=jax.ShapeDtypeStruct((1, b_pad), jnp.float32),
        grid=(num_blocks,),
        in_specs=[
            pl.BlockSpec((8, bc), lambda i: (0, i)),             # control points
            pl.BlockSpec((3, n_pad, 1, bc), lambda i: (0, 0, 0, i)),  # pts + mask
        ],
        out_specs=pl.BlockSpec((1, bc), lambda i: (0, i)),       # lane-dense VMEM
        compiler_params=pltpu.CompilerParams(
            dimension_semantics=("parallel",)),
    )(cp, pd)
    return out[0]


def bezier_loss_batch(ps_list, ctps_list):
    """Batched loss. ps_list[i]: (P_i, 2) points; ctps_list[i]: [x1, y1, x2, y2]."""
    B = len(ps_list)
    n_acts = [max(int(np.asarray(p).shape[0]) - 2, 0) for p in ps_list]
    # Bucket the inner-point padding to powers of two (floor 8) so ragged
    # batches share a compiled kernel.
    n_pad = max(8, 1 << int(np.ceil(np.log2(max(max(n_acts), 1)))))
    # Curves per grid step: lane-dense batch; keeps the ~4 (N_pad, T_PAD, BC)
    # f32 intermediates comfortably under the scoped-VMEM limit on all
    # generations (v7x has only 64 MiB physical VMEM).
    bc = 256 if n_pad <= 32 else 128
    b_pad = ((B + bc - 1) // bc) * bc

    cp = np.zeros((8, b_pad), np.float32)
    pd = np.zeros((3, n_pad, 1, b_pad), np.float32)
    for i, (p, c) in enumerate(zip(ps_list, ctps_list)):
        p = np.asarray(p, np.float64)
        c = np.asarray(c, np.float64)
        # Center per curve (the loss is translation-invariant); keeps float32
        # close to the float64 torch reference at pixel-scale coordinates.
        ctr = p.mean(axis=0)
        cp[:, i] = [p[0, 0] - ctr[0], c[0] - ctr[0], c[2] - ctr[0], p[-1, 0] - ctr[0],
                    p[0, 1] - ctr[1], c[1] - ctr[1], c[3] - ctr[1], p[-1, 1] - ctr[1]]
        n = n_acts[i]
        if n > 0:
            pd[0, :n, 0, i] = p[1:-1, 0] - ctr[0]
            pd[1, :n, 0, i] = p[1:-1, 1] - ctr[1]
            pd[2, :n, 0, i] = 1.0

    losses = _bezier_pallas(jnp.asarray(cp), jnp.asarray(pd), bc=bc)
    return losses[:B]


def bezier_loss(ps, ctps):
    """Single-curve loss, matching the PyTorch module's forward()."""
    return bezier_loss_batch([ps], [ctps])[0]


def _reference_loss(ps, ctps):
    """Pure numpy float64 reference mirroring the PyTorch forward()."""
    ps = np.asarray(ps, np.float64)
    ctps = np.asarray(ctps, np.float64)
    x0, y0 = ps[0, 0], ps[0, 1]
    x3, y3 = ps[-1, 0], ps[-1, 1]
    x1, y1, x2, y2 = ctps
    t = np.linspace(0.0, 1.0, T_ACT)
    u = 1.0 - t
    bx = (u * (u * (u * x0 + t * x1) + t * (u * x1 + t * x2))
          + t * (u * (u * x1 + t * x2) + t * (u * x2 + t * x3)))
    by = (u * (u * (u * y0 + t * y1) + t * (u * y1 + t * y2))
          + t * (u * (u * y1 + t * y2) + t * (u * y2 + t * y3)))
    bez = np.stack([bx, by], axis=1)                     # (81, 2)
    inner = ps[1:-1, :]                                  # (N, 2)
    diffs = bez[None, :, :] - inner[:, None, :]          # (N, 81, 2)
    dists = np.sqrt((diffs ** 2).sum(axis=2))            # (N, 81)
    return dists.min(axis=1).sum()


if __name__ == "__main__":
    key = jax.random.PRNGKey(0)

    # Small deterministic problem: 4 polygons with 8 points each
    # (-> 6 inner points) and 4 control-point params (x1, y1, x2, y2) each.
    B = 4
    keys = jax.random.split(key, 2 * B)
    ps_list, ctps_list = [], []
    for i in range(B):
        ps = jax.random.uniform(keys[2 * i], (8, 2), dtype=jnp.float32) * 10.0
        ctps = jax.random.uniform(keys[2 * i + 1], (4,), dtype=jnp.float32) * 10.0
        ps_list.append(np.asarray(ps))
        ctps_list.append(np.asarray(ctps))

    # Batched path (one pallas_call, all curves packed into lane-dense blocks).
    losses = bezier_loss_batch(ps_list, ctps_list)
    jax.block_until_ready(losses)
    refs = np.array([_reference_loss(p, c) for p, c in zip(ps_list, ctps_list)],
                    dtype=np.float64)
    assert np.allclose(np.asarray(losses, np.float64), refs, rtol=1e-4, atol=1e-4), \
        (losses, refs)

    # Single-curve path (matches the module API).
    loss0 = bezier_loss(ps_list[0], ctps_list[0])
    jax.block_until_ready(loss0)
    assert np.allclose(float(loss0), refs[0], rtol=1e-4, atol=1e-4), (loss0, refs[0])

    print("KERNEL_OK")
</pallas_src>

<mosaic_0001>
module attributes {stable_mosaic.version = 11 : i64} {
  func.func @_bezier_kernel(%arg0: i32, %arg1: memref<8x256xf32, #tpu.memory_space<vmem>>, %arg2: memref<3x8x1x256xf32, #tpu.memory_space<vmem>>, %arg3: memref<1x256xf32, #tpu.memory_space<vmem>>) attributes {dimension_semantics = [#tpu.dimension_semantics<parallel>], iteration_bounds = array<i64: 1>, scalar_prefetch = 0 : i64, scratch_operands = 0 : i64, tpu.core_type = #tpu.core_type<tc>, window_params = [{transform_indices = @transform_0, window_bounds = array<i64: 8, 256>}, {transform_indices = @transform_1, window_bounds = array<i64: 3, 8, 1, 256>}, {transform_indices = @transform_2, window_bounds = array<i64: 1, 256>}]} {
    %c0 = arith.constant 0 : index
    %c0_0 = arith.constant 0 : index
    %0 = vector.load %arg1[%c0, %c0_0] : memref<8x256xf32, #tpu.memory_space<vmem>>, vector<8x256xf32>
    %1 = vector.extract_strided_slice %0 {offsets = [0, 0], sizes = [1, 256], strides = [1, 1]} : vector<8x256xf32> to vector<1x256xf32>
    %2 = vector.extract_strided_slice %0 {offsets = [1, 0], sizes = [1, 256], strides = [1, 1]} : vector<8x256xf32> to vector<1x256xf32>
    %3 = vector.extract_strided_slice %0 {offsets = [2, 0], sizes = [1, 256], strides = [1, 1]} : vector<8x256xf32> to vector<1x256xf32>
    %4 = vector.extract_strided_slice %0 {offsets = [3, 0], sizes = [1, 256], strides = [1, 1]} : vector<8x256xf32> to vector<1x256xf32>
    %5 = vector.extract_strided_slice %0 {offsets = [4, 0], sizes = [1, 256], strides = [1, 1]} : vector<8x256xf32> to vector<1x256xf32>
    %6 = vector.extract_strided_slice %0 {offsets = [5, 0], sizes = [1, 256], strides = [1, 1]} : vector<8x256xf32> to vector<1x256xf32>
    %7 = vector.extract_strided_slice %0 {offsets = [6, 0], sizes = [1, 256], strides = [1, 1]} : vector<8x256xf32> to vector<1x256xf32>
    %8 = vector.extract_strided_slice %0 {offsets = [7, 0], sizes = [1, 256], strides = [1, 1]} : vector<8x256xf32> to vector<1x256xf32>
    %9 = tpu.iota {dimensions = array<i32: 0>} : vector<88x1xi32>
    %c80_i32 = arith.constant 80 : i32
    %10 = vector.broadcast %c80_i32 : i32 to vector<88x1xi32>
    %11 = arith.minsi %9, %10 : vector<88x1xi32>
    %12 = arith.sitofp %11 : vector<88x1xi32> to vector<88x1xf32>
    %cst = arith.constant 1.250000e-02 : f32
    %13 = vector.broadcast %cst : f32 to vector<88x1xf32>
    %14 = arith.mulf %12, %13 : vector<88x1xf32>
    %cst_1 = arith.constant 1.000000e+00 : f32
    %15 = vector.broadcast %cst_1 : f32 to vector<88x1xf32>
    %16 = arith.subf %15, %14 : vector<88x1xf32>
    %17 = vector.broadcast %16 : vector<88x1xf32> to vector<88x256xf32>
    %18 = vector.broadcast %2 : vector<1x256xf32> to vector<88x256xf32>
    %19 = arith.mulf %17, %18 : vector<88x256xf32>
    %20 = vector.broadcast %14 : vector<88x1xf32> to vector<88x256xf32>
    %21 = vector.broadcast %3 : vector<1x256xf32> to vector<88x256xf32>
    %22 = arith.mulf %20, %21 : vector<88x256xf32>
    %23 = arith.addf %19, %22 : vector<88x256xf32>
    %24 = vector.broadcast %16 : vector<88x1xf32> to vector<88x256xf32>
    %25 = vector.broadcast %6 : vector<1x256xf32> to vector<88x256xf32>
    %26 = arith.mulf %24, %25 : vector<88x256xf32>
    %27 = vector.broadcast %14 : vector<88x1xf32> to vector<88x256xf32>
    %28 = vector.broadcast %7 : vector<1x256xf32> to vector<88x256xf32>
    %29 = arith.mulf %27, %28 : vector<88x256xf32>
    %30 = arith.addf %26, %29 : vector<88x256xf32>
    %31 = vector.broadcast %16 : vector<88x1xf32> to vector<88x256xf32>
    %32 = vector.broadcast %1 : vector<1x256xf32> to vector<88x256xf32>
    %33 = arith.mulf %31, %32 : vector<88x256xf32>
    %34 = vector.broadcast %14 : vector<88x1xf32> to vector<88x256xf32>
    %35 = vector.broadcast %2 : vector<1x256xf32> to vector<88x256xf32>
    %36 = arith.mulf %34, %35 : vector<88x256xf32>
    %37 = arith.addf %33, %36 : vector<88x256xf32>
    %38 = vector.broadcast %16 : vector<88x1xf32> to vector<88x256xf32>
    %39 = arith.mulf %38, %37 : vector<88x256xf32>
    %40 = vector.broadcast %14 : vector<88x1xf32> to vector<88x256xf32>
    %41 = arith.mulf %40, %23 : vector<88x256xf32>
    %42 = arith.addf %39, %41 : vector<88x256xf32>
    %43 = vector.broadcast %16 : vector<88x1xf32> to vector<88x256xf32>
    %44 = arith.mulf %43, %42 : vector<88x256xf32>
    %45 = vector.broadcast %16 : vector<88x1xf32> to vector<88x256xf32>
    %46 = arith.mulf %45, %23 : vector<88x256xf32>
    %47 = vector.broadcast %16 : vector<88x1xf32> to vector<88x256xf32>
    %48 = vector.broadcast %3 : vector<1x256xf32> to vector<88x256xf32>
    %49 = arith.mulf %47, %48 : vector<88x256xf32>
    %50 = vector.broadcast %14 : vector<88x1xf32> to vector<88x256xf32>
    %51 = vector.broadcast %4 : vector<1x256xf32> to vector<88x256xf32>
    %52 = arith.mulf %50, %51 : vector<88x256xf32>
    %53 = arith.addf %49, %52 : vector<88x256xf32>
    %54 = vector.broadcast %14 : vector<88x1xf32> to vector<88x256xf32>
    %55 = arith.mulf %54, %53 : vector<88x256xf32>
    %56 = arith.addf %46, %55 : vector<88x256xf32>
    %57 = vector.broadcast %14 : vector<88x1xf32> to vector<88x256xf32>
    %58 = arith.mulf %57, %56 : vector<88x256xf32>
    %59 = arith.addf %44, %58 : vector<88x256xf32>
    %60 = vector.broadcast %16 : vector<88x1xf32> to vector<88x256xf32>
    %61 = vector.broadcast %5 : vector<1x256xf32> to vector<88x256xf32>
    %62 = arith.mulf %60, %61 : vector<88x256xf32>
    %63 = vector.broadcast %14 : vector<88x1xf32> to vector<88x256xf32>
    %64 = vector.broadcast %6 : vector<1x256xf32> to vector<88x256xf32>
    %65 = arith.mulf %63, %64 : vector<88x256xf32>
    %66 = arith.addf %62, %65 : vector<88x256xf32>
    %67 = vector.broadcast %16 : vector<88x1xf32> to vector<88x256xf32>
    %68 = arith.mulf %67, %66 : vector<88x256xf32>
    %69 = vector.broadcast %14 : vector<88x1xf32> to vector<88x256xf32>
    %70 = arith.mulf %69, %30 : vector<88x256xf32>
    %71 = arith.addf %68, %70 : vector<88x256xf32>
    %72 = vector.broadcast %16 : vector<88x1xf32> to vector<88x256xf32>
    %73 = arith.mulf %72, %71 : vector<88x256xf32>
    %74 = vector.broadcast %16 : vector<88x1xf32> to vector<88x256xf32>
    %75 = arith.mulf %74, %30 : vector<88x256xf32>
    %76 = vector.broadcast %16 : vector<88x1xf32> to vector<88x256xf32>
    %77 = vector.broadcast %7 : vector<1x256xf32> to vector<88x256xf32>
    %78 = arith.mulf %76, %77 : vector<88x256xf32>
    %79 = vector.broadcast %14 : vector<88x1xf32> to vector<88x256xf32>
    %80 = vector.broadcast %8 : vector<1x256xf32> to vector<88x256xf32>
    %81 = arith.mulf %79, %80 : vector<88x256xf32>
    %82 = arith.addf %78, %81 : vector<88x256xf32>
    %83 = vector.broadcast %14 : vector<88x1xf32> to vector<88x256xf32>
    %84 = arith.mulf %83, %82 : vector<88x256xf32>
    %85 = arith.addf %75, %84 : vector<88x256xf32>
    %86 = vector.broadcast %14 : vector<88x1xf32> to vector<88x256xf32>
    %87 = arith.mulf %86, %85 : vector<88x256xf32>
    %88 = arith.addf %73, %87 : vector<88x256xf32>
    %c0_2 = arith.constant 0 : index
    %c0_3 = arith.constant 0 : index
    %c0_4 = arith.constant 0 : index
    %c0_5 = arith.constant 0 : index
    %89 = vector.load %arg2[%c0_2, %c0_3, %c0_4, %c0_5] : memref<3x8x1x256xf32, #tpu.memory_space<vmem>>, vector<3x8x1x256xf32>
    %90 = vector.extract_strided_slice %89 {offsets = [0, 0, 0, 0], sizes = [1, 8, 1, 256], strides = [1, 1, 1, 1]} : vector<3x8x1x256xf32> to vector<1x8x1x256xf32>
    %91 = vector.shape_cast %90 : vector<1x8x1x256xf32> to vector<8x1x256xf32>
    %92 = vector.extract_strided_slice %89 {offsets = [1, 0, 0, 0], sizes = [1, 8, 1, 256], strides = [1, 1, 1, 1]} : vector<3x8x1x256xf32> to vector<1x8x1x256xf32>
    %93 = vector.shape_cast %92 : vector<1x8x1x256xf32> to vector<8x1x256xf32>
    %94 = vector.extract_strided_slice %89 {offsets = [2, 0, 0, 0], sizes = [1, 8, 1, 256], strides = [1, 1, 1, 1]} : vector<3x8x1x256xf32> to vector<1x8x1x256xf32>
    %95 = vector.shape_cast %94 : vector<1x8x1x256xf32> to vector<8x1x256xf32>
    %96 = vector.shape_cast %59 : vector<88x256xf32> to vector<1x88x256xf32>
    %97 = vector.broadcast %96 : vector<1x88x256xf32> to vector<8x88x256xf32>
    %98 = vector.broadcast %91 : vector<8x1x256xf32> to vector<8x88x256xf32>
    %99 = arith.subf %97, %98 : vector<8x88x256xf32>
    %100 = vector.shape_cast %88 : vector<88x256xf32> to vector<1x88x256xf32>
    %101 = vector.broadcast %100 : vector<1x88x256xf32> to vector<8x88x256xf32>
    %102 = vector.broadcast %93 : vector<8x1x256xf32> to vector<8x88x256xf32>
    %103 = arith.subf %101, %102 : vector<8x88x256xf32>
    %104 = arith.mulf %99, %99 : vector<8x88x256xf32>
    %105 = arith.mulf %103, %103 : vector<8x88x256xf32>
    %106 = arith.addf %104, %105 : vector<8x88x256xf32>
    %cst_6 = arith.constant dense<0x7F800000> : vector<8x256xf32>
    %107 = vector.multi_reduction <minimumf>, %106, %cst_6 [1] : vector<8x88x256xf32> to vector<8x256xf32>
    %108 = vector.shape_cast %107 : vector<8x256xf32> to vector<8x1x256xf32>
    %109 = math.sqrt %108 : vector<8x1x256xf32>
    %110 = arith.mulf %109, %95 : vector<8x1x256xf32>
    %cst_7 = arith.constant dense<0.000000e+00> : vector<1x256xf32>
    %111 = vector.multi_reduction <add>, %110, %cst_7 [0] : vector<8x1x256xf32> to vector<1x256xf32>
    %c0_8 = arith.constant 0 : index
    %c0_9 = arith.constant 0 : index
    %112 = vector.load %arg3[%c0_8, %c0_9] : memref<1x256xf32, #tpu.memory_space<vmem>>, vector<1x256xf32>
    tpu.vector_store %arg3[%c0_8, %c0_9], %111 {strides = array<i32>} : memref<1x256xf32, #tpu.memory_space<vmem>>, vector<1x256xf32>,
    return
  }
  func.func @transform_0(%arg0: i32) -> (i32, i32) {
    %c0_i32 = arith.constant 0 : i32
    %c0_i32_0 = arith.constant 0 : i32
    return %c0_i32, %arg0 : i32, i32
  }
  func.func @transform_1(%arg0: i32) -> (i32, i32, i32, i32) {
    %c0_i32 = arith.constant 0 : i32
    %c0_i32_0 = arith.constant 0 : i32
    %c0_i32_1 = arith.constant 0 : i32
    %c0_i32_2 = arith.constant 0 : i32
    return %c0_i32, %c0_i32_0, %c0_i32_1, %arg0 : i32, i32, i32, i32
  }
  func.func @transform_2(%arg0: i32) -> (i32, i32) {
    %c0_i32 = arith.constant 0 : i32
    %c0_i32_0 = arith.constant 0 : i32
    return %c0_i32, %arg0 : i32, i32
  }
}

</mosaic_0001>

<llo_original>
// kernel: _bezier_pallas.1
$region0: #{_bezier_pallas.1}
  #allocation0 [shape = 'u32[]', space=smem, size = 0x4, offset = 0x4, fixed_abs, tag = 'smem constant byte address 0x4 - core index']
  #allocation1 [shape = 'u32[144,128]{1,0:T(1,128)}', space=vmem, size = 0x12000, scoped, tag = 'internal scratch']
  %s0 = inlined_call_operand.hbm [shape: f32[8,256], index: 0, kind: input, shape index: {}]
  %s1 = inlined_call_operand.hbm [shape: f32[3,8,1,256], index: 1, kind: input, shape index: {}]
  %s2 = inlined_call_operand.hbm [shape: f32[1,256], index: 2, kind: output, shape index: {}]
  %s3 = sld [smem:[#allocation0]]
  $region26: #{_bezier_pallas.1} parent=0
    _
  %s5 = ssub.s32 1, %s3
  %s6 = scalar_select 0, %s5, %s3
  $region1: #{_bezier_pallas.1} parent=0
    #allocation2 [shape = 'u8[8192]{0}', space=vmem, size = 0x2000, scoped, tag = 'input window, operand 0, single buffered']
    #allocation3 [shape = 's32[1]{0}', space=sflag, size = 0x4, scoped, tag = 'scoped memory for _bezier_pallas.1']
    #allocation4 [shape = 's32[1]{0}', space=sflag, size = 0x4, scoped, tag = 'scoped memory for _bezier_pallas.1']
    #allocation5 [shape = 'u8[24576]{0}', space=vmem, size = 0x6000, scoped, tag = 'input window, operand 1, single buffered']
    #allocation6 [shape = 's32[1]{0}', space=sflag, size = 0x4, scoped, tag = 'scoped memory for _bezier_pallas.1']
    #allocation7 [shape = 'u8[1024]{0}', space=vmem, size = 0x400, scoped, tag = 'output window, operand 0, single buffered']
    %7 = vsyncpa [#allocation3], 0
    %8 = vsyncpa [#allocation6], 0
    %9 = vsyncpa [#allocation4], 0
    // Predicated region
    $region2: #{_bezier_pallas.1} parent=1 // pred_check
      _
    $region3: #{_bezier_pallas.1} parent=1 // pred_check_branch
      %11 = sbr.rel (0) target = $region5
    $region4: #{_bezier_pallas.1} parent=1 // pred_region
      %s13 = ssub.s32 256, 256
      %14 = vsyncadd [#allocation3], %s13
      %s16 = sshll.u32 [#allocation2], 4
      %s17 = int_to_ptr.vmem [resolvable:$true] %s16
      %19 = dma.hbm_to_vmem [thread:$0]  %s0, 256, %s17, [#allocation3]
    $region5: #{_bezier_pallas.1} parent=1 // pred_fallthru
      _
    // Predicated region
    $region6: #{_bezier_pallas.1} parent=1 // pred_check
      _
    $region7: #{_bezier_pallas.1} parent=1 // pred_check_branch
      %21 = sbr.rel (0) target = $region9
    $region8: #{_bezier_pallas.1} parent=1 // pred_region
      %s23 = ssub.s32 768, 768
      %24 = vsyncadd [#allocation6], %s23
      %s25 = sshll.u32 [#allocation5], 4
      %s26 = int_to_ptr.vmem [resolvable:$true] %s25
      %31 = dma.hbm_to_vmem [thread:$0]  %s1, 768, %s26, [#allocation6], 32, 32, 2
    $region9: #{_bezier_pallas.1} parent=1 // pred_fallthru
      _
    // Predicated region
    $region10: #{_bezier_pallas.1} parent=1 // pred_check
      _
    $region11: #{_bezier_pallas.1} parent=1 // pred_check_branch
      %33 = sbr.rel (0) target = $region13
    $region12: #{_bezier_pallas.1} parent=1 // pred_region
      %34 = dma.done [#allocation3], 256
    $region13: #{_bezier_pallas.1} parent=1 // pred_fallthru
      _
    // Predicated region
    $region14: #{_bezier_pallas.1} parent=1 // pred_check
      _
    $region15: #{_bezier_pallas.1} parent=1 // pred_check_branch
      %36 = sbr.rel (0) target = $region17
    $region16: #{_bezier_pallas.1} parent=1 // pred_region
      %37 = dma.done [#allocation6], 768
    $region17: #{_bezier_pallas.1} parent=1 // pred_fallthru
      _
    %v38 = vld [vmem:[#allocation2] sm:$0xff]
    %v39 = vld [vmem:[#allocation2 + $0x8] sm:$0xff]
    %v40 = vlaneseq
    %v41 = vshrl.u32 %v40, 7
    %v42 = vadd.s32 %v41, 8
    %v43 = vadd.s32 %v41, 16
    %v44 = vadd.s32 %v41, 24
    %v45 = vadd.s32 %v41, 32
    %v46 = vadd.s32 %v41, 40
    %v47 = vadd.s32 %v41, 48
    %v48 = vadd.s32 %v41, 56
    %v49 = vadd.s32 %v41, 64
    %v50 = vadd.s32 %v41, 72
    %v51 = vadd.s32 %v41, 80
    %vm52 = vcmp.lt.s32.totalorder %v41, 80
    %v53 = vsel %vm52, %v41, 80
    %vm54 = vcmp.lt.s32.totalorder %v42, 80
    %v55 = vsel %vm54, %v42, 80
    %vm56 = vcmp.lt.s32.totalorder %v43, 80
    %v57 = vsel %vm56, %v43, 80
    %vm58 = vcmp.lt.s32.totalorder %v44, 80
    %v59 = vsel %vm58, %v44, 80
    %vm60 = vcmp.lt.s32.totalorder %v45, 80
    %v61 = vsel %vm60, %v45, 80
    %vm62 = vcmp.lt.s32.totalorder %v46, 80
    %v63 = vsel %vm62, %v46, 80
    %vm64 = vcmp.lt.s32.totalorder %v47, 80
    %v65 = vsel %vm64, %v47, 80
    %vm66 = vcmp.lt.s32.totalorder %v48, 80
    %v67 = vsel %vm66, %v48, 80
    %vm68 = vcmp.lt.s32.totalorder %v49, 80
    %v69 = vsel %vm68, %v49, 80
    %vm70 = vcmp.lt.s32.totalorder %v50, 80
    %v71 = vsel %vm70, %v50, 80
    %vm72 = vcmp.lt.s32.totalorder %v51, 80
    %v73 = vsel %vm72, %v51, 80
    %v74 = vcvt.s32.f32 %v53
    %v75 = vcvt.s32.f32 %v55
    %v76 = vcvt.s32.f32 %v57
    %v77 = vcvt.s32.f32 %v59
    %v78 = vcvt.s32.f32 %v61
    %v79 = vcvt.s32.f32 %v63
    %v80 = vcvt.s32.f32 %v65
    %v81 = vcvt.s32.f32 %v67
    %v82 = vcvt.s32.f32 %v69
    %v83 = vcvt.s32.f32 %v71
    %v84 = vcvt.s32.f32 %v73
    %v85 = vmul.f32 %v74, 0.0125
    %v86 = vmul.f32 %v75, 0.0125
    %v87 = vmul.f32 %v76, 0.0125
    %v88 = vmul.f32 %v77, 0.0125
    %v89 = vmul.f32 %v78, 0.0125
    %v90 = vmul.f32 %v79, 0.0125
    %v91 = vmul.f32 %v80, 0.0125
    %v92 = vmul.f32 %v81, 0.0125
    %v93 = vmul.f32 %v82, 0.0125
    %v94 = vmul.f32 %v83, 0.0125
    %v95 = vmul.f32 %v84, 0.0125
    %v96 = vsub.f32 1.0, %v85
    %v97 = vsub.f32 1.0, %v86
    %v98 = vsub.f32 1.0, %v87
    %v99 = vsub.f32 1.0, %v88
    %v100 = vsub.f32 1.0, %v89
    %v101 = vsub.f32 1.0, %v90
    %v102 = vsub.f32 1.0, %v91
    %v103 = vsub.f32 1.0, %v92
    %v104 = vsub.f32 1.0, %v93
    %v105 = vsub.f32 1.0, %v94
    %v106 = vsub.f32 1.0, %v95
    %v107 = vlaneseq
    %v108 = vshrl.u32 %v107, 7
    %v109 = vsub.s32 1, %v108
    %v110 = vrot.slane %v38, %v109
    %v111 = vlaneseq
    %v112 = vshrl.u32 %v111, 7
    %v113 = vsub.s32 1, %v112
    %v114 = vrot.slane %v39, %v113
    %v115 = vmul.f32 %v96, %v110
    %v116 = vmul.f32 %v96, %v114
    %v117 = vmul.f32 %v97, %v110
    %v118 = vmul.f32 %v97, %v114
    %v119 = vmul.f32 %v98, %v110
    %v120 = vmul.f32 %v98, %v114
    %v121 = vmul.f32 %v99, %v110
    %v122 = vmul.f32 %v99, %v114
    %v123 = vmul.f32 %v100, %v110
    %v124 = vmul.f32 %v100, %v114
    %v125 = vmul.f32 %v101, %v110
    %v126 = vmul.f32 %v101, %v114
    %v127 = vmul.f32 %v102, %v110
    %v128 = vmul.f32 %v102, %v114
    %v129 = vmul.f32 %v103, %v110
    %v130 = vmul.f32 %v103, %v114
    %v131 = vmul.f32 %v104, %v110
    %v132 = vmul.f32 %v104, %v114
    %v133 = vmul.f32 %v105, %v110
    %v134 = vmul.f32 %v105, %v114
    %v135 = vmul.f32 %v106, %v110
    %v136 = vmul.f32 %v106, %v114
    %v137 = vlaneseq
    %v138 = vshrl.u32 %v137, 7
    %v139 = vsub.s32 2, %v138
    %v140 = vrot.slane %v38, %v139
    %v141 = vlaneseq
    %v142 = vshrl.u32 %v141, 7
    %v143 = vsub.s32 2, %v142
    %v144 = vrot.slane %v39, %v143
    %v145 = vmul.f32 %v85, %v140
    %v146 = vmul.f32 %v85, %v144
    %v147 = vmul.f32 %v86, %v140
    %v148 = vmul.f32 %v86, %v144
    %v149 = vmul.f32 %v87, %v140
    %v150 = vmul.f32 %v87, %v144
    %v151 = vmul.f32 %v88, %v140
    %v152 = vmul.f32 %v88, %v144
    %v153 = vmul.f32 %v89, %v140
    %v154 = vmul.f32 %v89, %v144
    %v155 = vmul.f32 %v90, %v140
    %v156 = vmul.f32 %v90, %v144
    %v157 = vmul.f32 %v91, %v140
    %v158 = vmul.f32 %v91, %v144
    %v159 = vmul.f32 %v92, %v140
    %v160 = vmul.f32 %v92, %v144
    %v161 = vmul.f32 %v93, %v140
    %v162 = vmul.f32 %v93, %v144
    %v163 = vmul.f32 %v94, %v140
    %v164 = vmul.f32 %v94, %v144
    %v165 = vmul.f32 %v95, %v140
    %v166 = vmul.f32 %v95, %v144
    %v167 = vadd.f32 %v115, %v145
    %v168 = vadd.f32 %v116, %v146
    %v169 = vadd.f32 %v117, %v147
    %v170 = vadd.f32 %v118, %v148
    %v171 = vadd.f32 %v119, %v149
    %v172 = vadd.f32 %v120, %v150
    %v173 = vadd.f32 %v121, %v151
    %v174 = vadd.f32 %v122, %v152
    %v175 = vadd.f32 %v123, %v153
    %v176 = vadd.f32 %v124, %v154
    %v177 = vadd.f32 %v125, %v155
    %v178 = vadd.f32 %v126, %v156
    %v179 = vadd.f32 %v127, %v157
    %v180 = vadd.f32 %v128, %v158
    %v181 = vadd.f32 %v129, %v159
    %v182 = vadd.f32 %v130, %v160
    %v183 = vadd.f32 %v131, %v161
    %v184 = vadd.f32 %v132, %v162
    %v185 = vadd.f32 %v133, %v163
    %v186 = vadd.f32 %v134, %v164
    %v187 = vadd.f32 %v135, %v165
    %v188 = vadd.f32 %v136, %v166
    %v189 = vlaneseq
    %v190 = vshrl.u32 %v189, 7
    %v191 = vsub.s32 5, %v190
    %v192 = vrot.slane %v38, %v191
    %v193 = vlaneseq
    %v194 = vshrl.u32 %v193, 7
    %v195 = vsub.s32 5, %v194
    %v196 = vrot.slane %v39, %v195
    %v197 = vmul.f32 %v96, %v192
    %v198 = vmul.f32 %v96, %v196
    %v199 = vmul.f32 %v97, %v192
    %v200 = vmul.f32 %v97, %v196
    %v201 = vmul.f32 %v98, %v192
    %v202 = vmul.f32 %v98, %v196
    %v203 = vmul.f32 %v99, %v192
    %v204 = vmul.f32 %v99, %v196
    %v205 = vmul.f32 %v100, %v192
    %v206 = vmul.f32 %v100, %v196
    %v207 = vmul.f32 %v101, %v192
    %v208 = vmul.f32 %v101, %v196
    %v209 = vmul.f32 %v102, %v192
    %v210 = vmul.f32 %v102, %v196
    %v211 = vmul.f32 %v103, %v192
    %v212 = vmul.f32 %v103, %v196
    %v213 = vmul.f32 %v104, %v192
    %v214 = vmul.f32 %v104, %v196
    %v215 = vmul.f32 %v105, %v192
    %v216 = vmul.f32 %v105, %v196
    %v217 = vmul.f32 %v106, %v192
    %v218 = vmul.f32 %v106, %v196
    %v219 = vlaneseq
    %v220 = vshrl.u32 %v219, 7
    %v221 = vsub.s32 6, %v220
    %v222 = vrot.slane %v38, %v221
    %v223 = vlaneseq
    %v224 = vshrl.u32 %v223, 7
    %v225 = vsub.s32 6, %v224
    %v226 = vrot.slane %v39, %v225
    %v227 = vmul.f32 %v85, %v222
    %v228 = vmul.f32 %v85, %v226
    %v229 = vmul.f32 %v86, %v222
    %v230 = vmul.f32 %v86, %v226
    %v231 = vmul.f32 %v87, %v222
    %v232 = vmul.f32 %v87, %v226
    %v233 = vmul.f32 %v88, %v222
    %v234 = vmul.f32 %v88, %v226
    %v235 = vmul.f32 %v89, %v222
    %v236 = vmul.f32 %v89, %v226
    %v237 = vmul.f32 %v90, %v222
    %v238 = vmul.f32 %v90, %v226
    %v239 = vmul.f32 %v91, %v222
    %v240 = vmul.f32 %v91, %v226
    %v241 = vmul.f32 %v92, %v222
    %v242 = vmul.f32 %v92, %v226
    %v243 = vmul.f32 %v93, %v222
    %v244 = vmul.f32 %v93, %v226
    %v245 = vmul.f32 %v94, %v222
    %v246 = vmul.f32 %v94, %v226
    %v247 = vmul.f32 %v95, %v222
    %v248 = vmul.f32 %v95, %v226
    %v249 = vadd.f32 %v197, %v227
    %v250 = vadd.f32 %v198, %v228
    %v251 = vadd.f32 %v199, %v229
    %v252 = vadd.f32 %v200, %v230
    %v253 = vadd.f32 %v201, %v231
    %v254 = vadd.f32 %v202, %v232
    %v255 = vadd.f32 %v203, %v233
    %v256 = vadd.f32 %v204, %v234
    %v257 = vadd.f32 %v205, %v235
    %v258 = vadd.f32 %v206, %v236
    %v259 = vadd.f32 %v207, %v237
    %v260 = vadd.f32 %v208, %v238
    %v261 = vadd.f32 %v209, %v239
    %v262 = vadd.f32 %v210, %v240
    %v263 = vadd.f32 %v211, %v241
    %v264 = vadd.f32 %v212, %v242
    %v265 = vadd.f32 %v213, %v243
    %v266 = vadd.f32 %v214, %v244
    %v267 = vadd.f32 %v215, %v245
    %v268 = vadd.f32 %v216, %v246
    %v269 = vadd.f32 %v217, %v247
    %v270 = vadd.f32 %v218, %v248
    %v271 = vlaneseq
    %v272 = vshrl.u32 %v271, 7
    %v273 = vsub.s32 0, %v272
    %v274 = vrot.slane %v38, %v273
    %v275 = vlaneseq
    %v276 = vshrl.u32 %v275, 7
    %v277 = vsub.s32 0, %v276
    %v278 = vrot.slane %v39, %v277
    %v279 = vmul.f32 %v96, %v274
    %v280 = vmul.f32 %v96, %v278
    %v281 = vmul.f32 %v97, %v274
    %v282 = vmul.f32 %v97, %v278
    %v283 = vmul.f32 %v98, %v274
    %v284 = vmul.f32 %v98, %v278
    %v285 = vmul.f32 %v99, %v274
    %v286 = vmul.f32 %v99, %v278
    %v287 = vmul.f32 %v100, %v274
    %v288 = vmul.f32 %v100, %v278
    %v289 = vmul.f32 %v101, %v274
    %v290 = vmul.f32 %v101, %v278
    %v291 = vmul.f32 %v102, %v274
    %v292 = vmul.f32 %v102, %v278
    %v293 = vmul.f32 %v103, %v274
    %v294 = vmul.f32 %v103, %v278
    %v295 = vmul.f32 %v104, %v274
    %v296 = vmul.f32 %v104, %v278
    %v297 = vmul.f32 %v105, %v274
    %v298 = vmul.f32 %v105, %v278
    %v299 = vmul.f32 %v106, %v274
    %v300 = vmul.f32 %v106, %v278
    %v301 = vmul.f32 %v85, %v110
    %v302 = vmul.f32 %v85, %v114
    %v303 = vmul.f32 %v86, %v110
    %v304 = vmul.f32 %v86, %v114
    %v305 = vmul.f32 %v87, %v110
    %v306 = vmul.f32 %v87, %v114
    %v307 = vmul.f32 %v88, %v110
    %v308 = vmul.f32 %v88, %v114
    %v309 = vmul.f32 %v89, %v110
    %v310 = vmul.f32 %v89, %v114
    %v311 = vmul.f32 %v90, %v110
    %v312 = vmul.f32 %v90, %v114
    %v313 = vmul.f32 %v91, %v110
    %v314 = vmul.f32 %v91, %v114
    %v315 = vmul.f32 %v92, %v110
    %v316 = vmul.f32 %v92, %v114
    %v317 = vmul.f32 %v93, %v110
    %v318 = vmul.f32 %v93, %v114
    %v319 = vmul.f32 %v94, %v110
    %v320 = vmul.f32 %v94, %v114
    %v321 = vmul.f32 %v95, %v110
    %v322 = vmul.f32 %v95, %v114
    %v323 = vadd.f32 %v279, %v301
    %v324 = vadd.f32 %v280, %v302
    %v325 = vadd.f32 %v281, %v303
    %v326 = vadd.f32 %v282, %v304
    %v327 = vadd.f32 %v283, %v305
    %v328 = vadd.f32 %v284, %v306
    %v329 = vadd.f32 %v285, %v307
    %v330 = vadd.f32 %v286, %v308
    %v331 = vadd.f32 %v287, %v309
    %v332 = vadd.f32 %v288, %v310
    %v333 = vadd.f32 %v289, %v311
    %v334 = vadd.f32 %v290, %v312
    %v335 = vadd.f32 %v291, %v313
    %v336 = vadd.f32 %v292, %v314
    %v337 = vadd.f32 %v293, %v315
    %v338 = vadd.f32 %v294, %v316
    %v339 = vadd.f32 %v295, %v317
    %v340 = vadd.f32 %v296, %v318
    %v341 = vadd.f32 %v297, %v319
    %v342 = vadd.f32 %v298, %v320
    %v343 = vadd.f32 %v299, %v321
    %v344 = vadd.f32 %v300, %v322
    %v345 = vmul.f32 %v96, %v323
    %v346 = vmul.f32 %v96, %v324
    %v347 = vmul.f32 %v97, %v325
    %v348 = vmul.f32 %v97, %v326
    %v349 = vmul.f32 %v98, %v327
    %v350 = vmul.f32 %v98, %v328
    %v351 = vmul.f32 %v99, %v329
    %v352 = vmul.f32 %v99, %v330
    %v353 = vmul.f32 %v100, %v331
    %v354 = vmul.f32 %v100, %v332
    %v355 = vmul.f32 %v101, %v333
    %v356 = vmul.f32 %v101, %v334
    %v357 = vmul.f32 %v102, %v335
    %v358 = vmul.f32 %v102, %v336
    %v359 = vmul.f32 %v103, %v337
    %v360 = vmul.f32 %v103, %v338
    %v361 = vmul.f32 %v104, %v339
    %v362 = vmul.f32 %v104, %v340
    %v363 = vmul.f32 %v105, %v341
    %v364 = vmul.f32 %v105, %v342
    %v365 = vmul.f32 %v106, %v343
    %v366 = vmul.f32 %v106, %v344
    %v367 = vmul.f32 %v85, %v167
    %v368 = vmul.f32 %v85, %v168
    %v369 = vmul.f32 %v86, %v169
    %v370 = vmul.f32 %v86, %v170
    %v371 = vmul.f32 %v87, %v171
    %v372 = vmul.f32 %v87, %v172
    %v373 = vmul.f32 %v88, %v173
    %v374 = vmul.f32 %v88, %v174
    %v375 = vmul.f32 %v89, %v175
    %v376 = vmul.f32 %v89, %v176
    %v377 = vmul.f32 %v90, %v177
    %v378 = vmul.f32 %v90, %v178
    %v379 = vmul.f32 %v91, %v179
    %v380 = vmul.f32 %v91, %v180
    %v381 = vmul.f32 %v92, %v181
    %v382 = vmul.f32 %v92, %v182
    %v383 = vmul.f32 %v93, %v183
    %v384 = vmul.f32 %v93, %v184
    %v385 = vmul.f32 %v94, %v185
    %v386 = vmul.f32 %v94, %v186
    %v387 = vmul.f32 %v95, %v187
    %v388 = vmul.f32 %v95, %v188
    %v389 = vadd.f32 %v345, %v367
    %v390 = vadd.f32 %v346, %v368
    %v391 = vadd.f32 %v347, %v369
    %v392 = vadd.f32 %v348, %v370
    %v393 = vadd.f32 %v349, %v371
    %v394 = vadd.f32 %v350, %v372
    %v395 = vadd.f32 %v351, %v373
    %v396 = vadd.f32 %v352, %v374
    %v397 = vadd.f32 %v353, %v375
    %v398 = vadd.f32 %v354, %v376
    %v399 = vadd.f32 %v355, %v377
    %v400 = vadd.f32 %v356, %v378
    %v401 = vadd.f32 %v357, %v379
    %v402 = vadd.f32 %v358, %v380
    %v403 = vadd.f32 %v359, %v381
    %v404 = vadd.f32 %v360, %v382
    %v405 = vadd.f32 %v361, %v383
    %v406 = vadd.f32 %v362, %v384
    %v407 = vadd.f32 %v363, %v385
    %v408 = vadd.f32 %v364, %v386
    %v409 = vadd.f32 %v365, %v387
    %v410 = vadd.f32 %v366, %v388
    %v411 = vmul.f32 %v96, %v389
    %v412 = vmul.f32 %v96, %v390
    %v413 = vmul.f32 %v97, %v391
    %v414 = vmul.f32 %v97, %v392
    %v415 = vmul.f32 %v98, %v393
    %v416 = vmul.f32 %v98, %v394
    %v417 = vmul.f32 %v99, %v395
    %v418 = vmul.f32 %v99, %v396
    %v419 = vmul.f32 %v100, %v397
    %v420 = vmul.f32 %v100, %v398
    %v421 = vmul.f32 %v101, %v399
    %v422 = vmul.f32 %v101, %v400
    %v423 = vmul.f32 %v102, %v401
    %v424 = vmul.f32 %v102, %v402
    %v425 = vmul.f32 %v103, %v403
    %v426 = vmul.f32 %v103, %v404
    %v427 = vmul.f32 %v104, %v405
    %v428 = vmul.f32 %v104, %v406
    %v429 = vmul.f32 %v105, %v407
    %v430 = vmul.f32 %v105, %v408
    %v431 = vmul.f32 %v106, %v409
    %v432 = vmul.f32 %v106, %v410
    %v433 = vmul.f32 %v96, %v167
    %v434 = vmul.f32 %v96, %v168
    %v435 = vmul.f32 %v97, %v169
    %v436 = vmul.f32 %v97, %v170
    %v437 = vmul.f32 %v98, %v171
    %v438 = vmul.f32 %v98, %v172
    %v439 = vmul.f32 %v99, %v173
    %v440 = vmul.f32 %v99, %v174
    %v441 = vmul.f32 %v100, %v175
    %v442 = vmul.f32 %v100, %v176
    %v443 = vmul.f32 %v101, %v177
    %v444 = vmul.f32 %v101, %v178
    %v445 = vmul.f32 %v102, %v179
    %v446 = vmul.f32 %v102, %v180
    %v447 = vmul.f32 %v103, %v181
    %v448 = vmul.f32 %v103, %v182
    %v449 = vmul.f32 %v104, %v183
    %v450 = vmul.f32 %v104, %v184
    %v451 = vmul.f32 %v105, %v185
    %v452 = vmul.f32 %v105, %v186
    %v453 = vmul.f32 %v106, %v187
    %v454 = vmul.f32 %v106, %v188
    %v455 = vmul.f32 %v96, %v140
    %v456 = vmul.f32 %v96, %v144
    %v457 = vmul.f32 %v97, %v140
    %v458 = vmul.f32 %v97, %v144
    %v459 = vmul.f32 %v98, %v140
    %v460 = vmul.f32 %v98, %v144
    %v461 = vmul.f32 %v99, %v140
    %v462 = vmul.f32 %v99, %v144
    %v463 = vmul.f32 %v100, %v140
    %v464 = vmul.f32 %v100, %v144
    %v465 = vmul.f32 %v101, %v140
    %v466 = vmul.f32 %v101, %v144
    %v467 = vmul.f32 %v102, %v140
    %v468 = vmul.f32 %v102, %v144
    %v469 = vmul.f32 %v103, %v140
    %v470 = vmul.f32 %v103, %v144
    %v471 = vmul.f32 %v104, %v140
    %v472 = vmul.f32 %v104, %v144
    %v473 = vmul.f32 %v105, %v140
    %v474 = vmul.f32 %v105, %v144
    %v475 = vmul.f32 %v106, %v140
    %v476 = vmul.f32 %v106, %v144
    %v477 = vlaneseq
    %v478 = vshrl.u32 %v477, 7
    %v479 = vsub.s32 3, %v478
    %v480 = vrot.slane %v38, %v479
    %v481 = vlaneseq
    %v482 = vshrl.u32 %v481, 7
    %v483 = vsub.s32 3, %v482
    %v484 = vrot.slane %v39, %v483
    %v485 = vmul.f32 %v85, %v480
    %v486 = vmul.f32 %v85, %v484
    %v487 = vmul.f32 %v86, %v480
    %v488 = vmul.f32 %v86, %v484
    %v489 = vmul.f32 %v87, %v480
    %v490 = vmul.f32 %v87, %v484
    %v491 = vmul.f32 %v88, %v480
    %v492 = vmul.f32 %v88, %v484
    %v493 = vmul.f32 %v89, %v480
    %v494 = vmul.f32 %v89, %v484
    %v495 = vmul.f32 %v90, %v480
    %v496 = vmul.f32 %v90, %v484
    %v497 = vmul.f32 %v91, %v480
    %v498 = vmul.f32 %v91, %v484
    %v499 = vmul.f32 %v92, %v480
    %v500 = vmul.f32 %v92, %v484
    %v501 = vmul.f32 %v93, %v480
    %v502 = vmul.f32 %v93, %v484
    %v503 = vmul.f32 %v94, %v480
    %v504 = vmul.f32 %v94, %v484
    %v505 = vmul.f32 %v95, %v480
    %v506 = vmul.f32 %v95, %v484
    %v507 = vadd.f32 %v455, %v485
    %v508 = vadd.f32 %v456, %v486
    %v509 = vadd.f32 %v457, %v487
    %v510 = vadd.f32 %v458, %v488
    %v511 = vadd.f32 %v459, %v489
    %v512 = vadd.f32 %v460, %v490
    %v513 = vadd.f32 %v461, %v491
    %v514 = vadd.f32 %v462, %v492
    %v515 = vadd.f32 %v463, %v493
    %v516 = vadd.f32 %v464, %v494
    %v517 = vadd.f32 %v465, %v495
    %v518 = vadd.f32 %v466, %v496
    %v519 = vadd.f32 %v467, %v497
    %v520 = vadd.f32 %v468, %v498
    %v521 = vadd.f32 %v469, %v499
    %v522 = vadd.f32 %v470, %v500
    %v523 = vadd.f32 %v471, %v501
    %v524 = vadd.f32 %v472, %v502
    %v525 = vadd.f32 %v473, %v503
    %v526 = vadd.f32 %v474, %v504
    %v527 = vadd.f32 %v475, %v505
    %v528 = vadd.f32 %v476, %v506
    %v529 = vmul.f32 %v85, %v507
    %v530 = vmul.f32 %v85, %v508
    %v531 = vmul.f32 %v86, %v509
    %v532 = vmul.f32 %v86, %v510
    %v533 = vmul.f32 %v87, %v511
    %v534 = vmul.f32 %v87, %v512
    %v535 = vmul.f32 %v88, %v513
    %v536 = vmul.f32 %v88, %v514
    %v537 = vmul.f32 %v89, %v515
    %v538 = vmul.f32 %v89, %v516
    %v539 = vmul.f32 %v90, %v517
    %v540 = vmul.f32 %v90, %v518
    %v541 = vmul.f32 %v91, %v519
    %v542 = vmul.f32 %v91, %v520
    %v543 = vmul.f32 %v92, %v521
    %v544 = vmul.f32 %v92, %v522
    %v545 = vmul.f32 %v93, %v523
    %v546 = vmul.f32 %v93, %v524
    %v547 = vmul.f32 %v94, %v525
    %v548 = vmul.f32 %v94, %v526
    %v549 = vmul.f32 %v95, %v527
    %v550 = vmul.f32 %v95, %v528
    %v551 = vadd.f32 %v433, %v529
    %v552 = vadd.f32 %v434, %v530
    %v553 = vadd.f32 %v435, %v531
    %v554 = vadd.f32 %v436, %v532
    %v555 = vadd.f32 %v437, %v533
    %v556 = vadd.f32 %v438, %v534
    %v557 = vadd.f32 %v439, %v535
    %v558 = vadd.f32 %v440, %v536
    %v559 = vadd.f32 %v441, %v537
    %v560 = vadd.f32 %v442, %v538
    %v561 = vadd.f32 %v443, %v539
    %v562 = vadd.f32 %v444, %v540
    %v563 = vadd.f32 %v445, %v541
    %v564 = vadd.f32 %v446, %v542
    %v565 = vadd.f32 %v447, %v543
    %v566 = vadd.f32 %v448, %v544
    %v567 = vadd.f32 %v449, %v545
    %v568 = vadd.f32 %v450, %v546
    %v569 = vadd.f32 %v451, %v547
    %v570 = vadd.f32 %v452, %v548
    %v571 = vadd.f32 %v453, %v549
    %v572 = vadd.f32 %v454, %v550
    %v573 = vmul.f32 %v85, %v551
    %v574 = vmul.f32 %v85, %v552
    %v575 = vmul.f32 %v86, %v553
    %v576 = vmul.f32 %v86, %v554
    %v577 = vmul.f32 %v87, %v555
    %v578 = vmul.f32 %v87, %v556
    %v579 = vmul.f32 %v88, %v557
    %v580 = vmul.f32 %v88, %v558
    %v581 = vmul.f32 %v89, %v559
    %v582 = vmul.f32 %v89, %v560
    %v583 = vmul.f32 %v90, %v561
    %v584 = vmul.f32 %v90, %v562
    %v585 = vmul.f32 %v91, %v563
    %v586 = vmul.f32 %v91, %v564
    %v587 = vmul.f32 %v92, %v565
    %v588 = vmul.f32 %v92, %v566
    %v589 = vmul.f32 %v93, %v567
    %v590 = vmul.f32 %v93, %v568
    %v591 = vmul.f32 %v94, %v569
    %v592 = vmul.f32 %v94, %v570
    %v593 = vmul.f32 %v95, %v571
    %v594 = vmul.f32 %v95, %v572
    %v595 = vadd.f32 %v411, %v573
    %v596 = vadd.f32 %v412, %v574
    %v597 = vadd.f32 %v413, %v575
    %v598 = vadd.f32 %v414, %v576
    %v599 = vadd.f32 %v415, %v577
    %v600 = vadd.f32 %v416, %v578
    %v601 = vadd.f32 %v417, %v579
    %v602 = vadd.f32 %v418, %v580
    %v603 = vadd.f32 %v419, %v581
    %v604 = vadd.f32 %v420, %v582
    %v605 = vadd.f32 %v421, %v583
    %v606 = vadd.f32 %v422, %v584
    %v607 = vadd.f32 %v423, %v585
    %v608 = vadd.f32 %v424, %v586
    %v609 = vadd.f32 %v425, %v587
    %v610 = vadd.f32 %v426, %v588
    %v611 = vadd.f32 %v427, %v589
    %v612 = vadd.f32 %v428, %v590
    %v613 = vadd.f32 %v429, %v591
    %v614 = vadd.f32 %v430, %v592
    %v615 = vadd.f32 %v431, %v593
    %v616 = vadd.f32 %v432, %v594
    %v617 = vlaneseq
    %v618 = vshrl.u32 %v617, 7
    %v619 = vsub.s32 4, %v618
    %v620 = vrot.slane %v38, %v619
    %v621 = vlaneseq
    %v622 = vshrl.u32 %v621, 7
    %v623 = vsub.s32 4, %v622
    %v624 = vrot.slane %v39, %v623
    %v625 = vmul.f32 %v96, %v620
    %v626 = vmul.f32 %v96, %v624
    %v627 = vmul.f32 %v97, %v620
    %v628 = vmul.f32 %v97, %v624
    %v629 = vmul.f32 %v98, %v620
    %v630 = vmul.f32 %v98, %v624
    %v631 = vmul.f32 %v99, %v620
    %v632 = vmul.f32 %v99, %v624
    %v633 = vmul.f32 %v100, %v620
    %v634 = vmul.f32 %v100, %v624
    %v635 = vmul.f32 %v101, %v620
    %v636 = vmul.f32 %v101, %v624
    %v637 = vmul.f32 %v102, %v620
    %v638 = vmul.f32 %v102, %v624
    %v639 = vmul.f32 %v103, %v620
    %v640 = vmul.f32 %v103, %v624
    %v641 = vmul.f32 %v104, %v620
    %v642 = vmul.f32 %v104, %v624
    %v643 = vmul.f32 %v105, %v620
    %v644 = vmul.f32 %v105, %v624
    %v645 = vmul.f32 %v106, %v620
    %v646 = vmul.f32 %v106, %v624
    %v647 = vmul.f32 %v85, %v192
    %v648 = vmul.f32 %v85, %v196
    %v649 = vmul.f32 %v86, %v192
    %v650 = vmul.f32 %v86, %v196
    %v651 = vmul.f32 %v87, %v192
    %v652 = vmul.f32 %v87, %v196
    %v653 = vmul.f32 %v88, %v192
    %v654 = vmul.f32 %v88, %v196
    %v655 = vmul.f32 %v89, %v192
    %v656 = vmul.f32 %v89, %v196
    %v657 = vmul.f32 %v90, %v192
    %v658 = vmul.f32 %v90, %v196
    %v659 = vmul.f32 %v91, %v192
    %v660 = vmul.f32 %v91, %v196
    %v661 = vmul.f32 %v92, %v192
    %v662 = vmul.f32 %v92, %v196
    %v663 = vmul.f32 %v93, %v192
    %v664 = vmul.f32 %v93, %v196
    %v665 = vmul.f32 %v94, %v192
    %v666 = vmul.f32 %v94, %v196
    %v667 = vmul.f32 %v95, %v192
    %v668 = vmul.f32 %v95, %v196
    %v669 = vadd.f32 %v625, %v647
    %v670 = vadd.f32 %v626, %v648
    %v671 = vadd.f32 %v627, %v649
    %v672 = vadd.f32 %v628, %v650
    %v673 = vadd.f32 %v629, %v651
    %v674 = vadd.f32 %v630, %v652
    %v675 = vadd.f32 %v631, %v653
    %v676 = vadd.f32 %v632, %v654
    %v677 = vadd.f32 %v633, %v655
    %v678 = vadd.f32 %v634, %v656
    %v679 = vadd.f32 %v635, %v657
    %v680 = vadd.f32 %v636, %v658
    %v681 = vadd.f32 %v637, %v659
    %v682 = vadd.f32 %v638, %v660
    %v683 = vadd.f32 %v639, %v661
    %v684 = vadd.f32 %v640, %v662
    %v685 = vadd.f32 %v641, %v663
    %v686 = vadd.f32 %v642, %v664
    %v687 = vadd.f32 %v643, %v665
    %v688 = vadd.f32 %v644, %v666
    %v689 = vadd.f32 %v645, %v667
    %v690 = vadd.f32 %v646, %v668
    %v691 = vmul.f32 %v96, %v669
    %v692 = vmul.f32 %v96, %v670
    %v693 = vmul.f32 %v97, %v671
    %v694 = vmul.f32 %v97, %v672
    %v695 = vmul.f32 %v98, %v673
    %v696 = vmul.f32 %v98, %v674
    %v697 = vmul.f32 %v99, %v675
    %v698 = vmul.f32 %v99, %v676
    %v699 = vmul.f32 %v100, %v677
    %v700 = vmul.f32 %v100, %v678
    %v701 = vmul.f32 %v101, %v679
    %v702 = vmul.f32 %v101, %v680
    %v703 = vmul.f32 %v102, %v681
    %v704 = vmul.f32 %v102, %v682
    %v705 = vmul.f32 %v103, %v683
    %v706 = vmul.f32 %v103, %v684
    %v707 = vmul.f32 %v104, %v685
    %v708 = vmul.f32 %v104, %v686
    %v709 = vmul.f32 %v105, %v687
    %v710 = vmul.f32 %v105, %v688
    %v711 = vmul.f32 %v106, %v689
    %v712 = vmul.f32 %v106, %v690
    %v713 = vmul.f32 %v85, %v249
    %v714 = vmul.f32 %v85, %v250
    %v715 = vmul.f32 %v86, %v251
    %v716 = vmul.f32 %v86, %v252
    %v717 = vmul.f32 %v87, %v253
    %v718 = vmul.f32 %v87, %v254
    %v719 = vmul.f32 %v88, %v255
    %v720 = vmul.f32 %v88, %v256
    %v721 = vmul.f32 %v89, %v257
    %v722 = vmul.f32 %v89, %v258
    %v723 = vmul.f32 %v90, %v259
    %v724 = vmul.f32 %v90, %v260
    %v725 = vmul.f32 %v91, %v261
    %v726 = vmul.f32 %v91, %v262
    %v727 = vmul.f32 %v92, %v263
    %v728 = vmul.f32 %v92, %v264
    %v729 = vmul.f32 %v93, %v265
    %v730 = vmul.f32 %v93, %v266
    %v731 = vmul.f32 %v94, %v267
    %v732 = vmul.f32 %v94, %v268
    %v733 = vmul.f32 %v95, %v269
    %v734 = vmul.f32 %v95, %v270
    %v735 = vadd.f32 %v691, %v713
    %v736 = vadd.f32 %v692, %v714
    %v737 = vadd.f32 %v693, %v715
    %v738 = vadd.f32 %v694, %v716
    %v739 = vadd.f32 %v695, %v717
    %v740 = vadd.f32 %v696, %v718
    %v741 = vadd.f32 %v697, %v719
    %v742 = vadd.f32 %v698, %v720
    %v743 = vadd.f32 %v699, %v721
    %v744 = vadd.f32 %v700, %v722
    %v745 = vadd.f32 %v701, %v723
    %v746 = vadd.f32 %v702, %v724
    %v747 = vadd.f32 %v703, %v725
    %v748 = vadd.f32 %v704, %v726
    %v749 = vadd.f32 %v705, %v727
    %v750 = vadd.f32 %v706, %v728
    %v751 = vadd.f32 %v707, %v729
    %v752 = vadd.f32 %v708, %v730
    %v753 = vadd.f32 %v709, %v731
    %v754 = vadd.f32 %v710, %v732
    %v755 = vadd.f32 %v711, %v733
    %v756 = vadd.f32 %v712, %v734
    %v757 = vmul.f32 %v96, %v735
    %v758 = vmul.f32 %v96, %v736
    %v759 = vmul.f32 %v97, %v737
    %v760 = vmul.f32 %v97, %v738
    %v761 = vmul.f32 %v98, %v739
    %v762 = vmul.f32 %v98, %v740
    %v763 = vmul.f32 %v99, %v741
    %v764 = vmul.f32 %v99, %v742
    %v765 = vmul.f32 %v100, %v743
    %v766 = vmul.f32 %v100, %v744
    %v767 = vmul.f32 %v101, %v745
    %v768 = vmul.f32 %v101, %v746
    %v769 = vmul.f32 %v102, %v747
    %v770 = vmul.f32 %v102, %v748
    %v771 = vmul.f32 %v103, %v749
    %v772 = vmul.f32 %v103, %v750
    %v773 = vmul.f32 %v104, %v751
    %v774 = vmul.f32 %v104, %v752
    %v775 = vmul.f32 %v105, %v753
    %v776 = vmul.f32 %v105, %v754
    %v777 = vmul.f32 %v106, %v755
    %v778 = vmul.f32 %v106, %v756
    %v779 = vmul.f32 %v96, %v249
    %v780 = vmul.f32 %v96, %v250
    %v781 = vmul.f32 %v97, %v251
    %v782 = vmul.f32 %v97, %v252
    %v783 = vmul.f32 %v98, %v253
    %v784 = vmul.f32 %v98, %v254
    %v785 = vmul.f32 %v99, %v255
    %v786 = vmul.f32 %v99, %v256
    %v787 = vmul.f32 %v100, %v257
    %v788 = vmul.f32 %v100, %v258
    %v789 = vmul.f32 %v101, %v259
    %v790 = vmul.f32 %v101, %v260
    %v791 = vmul.f32 %v102, %v261
    %v792 = vmul.f32 %v102, %v262
    %v793 = vmul.f32 %v103, %v263
    %v794 = vmul.f32 %v103, %v264
    %v795 = vmul.f32 %v104, %v265
    %v796 = vmul.f32 %v104, %v266
    %v797 = vmul.f32 %v105, %v267
    %v798 = vmul.f32 %v105, %v268
    %v799 = vmul.f32 %v106, %v269
    %v800 = vmul.f32 %v106, %v270
    %v801 = vmul.f32 %v96, %v222
    %v802 = vmul.f32 %v96, %v226
    %v803 = vmul.f32 %v97, %v222
    %v804 = vmul.f32 %v97, %v226
    %v805 = vmul.f32 %v98, %v222
    %v806 = vmul.f32 %v98, %v226
    %v807 = vmul.f32 %v99, %v222
    %v808 = vmul.f32 %v99, %v226
    %v809 = vmul.f32 %v100, %v222
    %v810 = vmul.f32 %v100, %v226
    %v811 = vmul.f32 %v101, %v222
    %v812 = vmul.f32 %v101, %v226
    %v813 = vmul.f32 %v102, %v222
    %v814 = vmul.f32 %v102, %v226
    %v815 = vmul.f32 %v103, %v222
    %v816 = vmul.f32 %v103, %v226
    %v817 = vmul.f32 %v104, %v222
    %v818 = vmul.f32 %v104, %v226
    %v819 = vmul.f32 %v105, %v222
    %v820 = vmul.f32 %v105, %v226
    %v821 = vmul.f32 %v106, %v222
    %v822 = vmul.f32 %v106, %v226
    %v823 = vlaneseq
    %v824 = vshrl.u32 %v823, 7
    %v825 = vsub.s32 7, %v824
    %v826 = vrot.slane %v38, %v825
    %v827 = vlaneseq
    %v828 = vshrl.u32 %v827, 7
    %v829 = vsub.s32 7, %v828
    %v830 = vrot.slane %v39, %v829
    %v831 = vmul.f32 %v85, %v826
    %v832 = vmul.f32 %v85, %v830
    %v833 = vmul.f32 %v86, %v826
    %v834 = vmul.f32 %v86, %v830
    %v835 = vmul.f32 %v87, %v826
    %v836 = vmul.f32 %v87, %v830
    %v837 = vmul.f32 %v88, %v826
    %v838 = vmul.f32 %v88, %v830
    %v839 = vmul.f32 %v89, %v826
    %v840 = vmul.f32 %v89, %v830
    %v841 = vmul.f32 %v90, %v826
    %v842 = vmul.f32 %v90, %v830
    %v843 = vmul.f32 %v91, %v826
    %v844 = vmul.f32 %v91, %v830
    %v845 = vmul.f32 %v92, %v826
    %v846 = vmul.f32 %v92, %v830
    %v847 = vmul.f32 %v93, %v826
    %v848 = vmul.f32 %v93, %v830
    %v849 = vmul.f32 %v94, %v826
    %v850 = vmul.f32 %v94, %v830
    %v851 = vmul.f32 %v95, %v826
    %v852 = vmul.f32 %v95, %v830
    %v853 = vadd.f32 %v801, %v831
    %v854 = vadd.f32 %v802, %v832
    %v855 = vadd.f32 %v803, %v833
    %v856 = vadd.f32 %v804, %v834
    %v857 = vadd.f32 %v805, %v835
    %v858 = vadd.f32 %v806, %v836
    %v859 = vadd.f32 %v807, %v837
    %v860 = vadd.f32 %v808, %v838
    %v861 = vadd.f32 %v809, %v839
    %v862 = vadd.f32 %v810, %v840
    %v863 = vadd.f32 %v811, %v841
    %v864 = vadd.f32 %v812, %v842
    %v865 = vadd.f32 %v813, %v843
    %v866 = vadd.f32 %v814, %v844
    %v867 = vadd.f32 %v815, %v845
    %v868 = vadd.f32 %v816, %v846
    %v869 = vadd.f32 %v817, %v847
    %v870 = vadd.f32 %v818, %v848
    %v871 = vadd.f32 %v819, %v849
    %v872 = vadd.f32 %v820, %v850
    %v873 = vadd.f32 %v821, %v851
    %v874 = vadd.f32 %v822, %v852
    %v875 = vmul.f32 %v85, %v853
    %v876 = vmul.f32 %v85, %v854
    %v877 = vmul.f32 %v86, %v855
    %v878 = vmul.f32 %v86, %v856
    %v879 = vmul.f32 %v87, %v857
    %v880 = vmul.f32 %v87, %v858
    %v881 = vmul.f32 %v88, %v859
    %v882 = vmul.f32 %v88, %v860
    %v883 = vmul.f32 %v89, %v861
    %v884 = vmul.f32 %v89, %v862
    %v885 = vmul.f32 %v90, %v863
    %v886 = vmul.f32 %v90, %v864
    %v887 = vmul.f32 %v91, %v865
    %v888 = vmul.f32 %v91, %v866
    %v889 = vmul.f32 %v92, %v867
    %v890 = vmul.f32 %v92, %v868
    %v891 = vmul.f32 %v93, %v869
    %v892 = vmul.f32 %v93, %v870
    %v893 = vmul.f32 %v94, %v871
    %v894 = vmul.f32 %v94, %v872
    %v895 = vmul.f32 %v95, %v873
    %v896 = vmul.f32 %v95, %v874
    %v897 = vadd.f32 %v779, %v875
    %v898 = vadd.f32 %v780, %v876
    %v899 = vadd.f32 %v781, %v877
    %v900 = vadd.f32 %v782, %v878
    %v901 = vadd.f32 %v783, %v879
    %v902 = vadd.f32 %v784, %v880
    %v903 = vadd.f32 %v785, %v881
    %v904 = vadd.f32 %v786, %v882
    %v905 = vadd.f32 %v787, %v883
    %v906 = vadd.f32 %v788, %v884
    %v907 = vadd.f32 %v789, %v885
    %v908 = vadd.f32 %v790, %v886
    %v909 = vadd.f32 %v791, %v887
    %v910 = vadd.f32 %v792, %v888
    %v911 = vadd.f32 %v793, %v889
    %v912 = vadd.f32 %v794, %v890
    %v913 = vadd.f32 %v795, %v891
    %v914 = vadd.f32 %v796, %v892
    %v915 = vadd.f32 %v797, %v893
    %v916 = vadd.f32 %v798, %v894
    %v917 = vadd.f32 %v799, %v895
    %v918 = vadd.f32 %v800, %v896
    %v919 = vmul.f32 %v85, %v897
    %v920 = vmul.f32 %v85, %v898
    %v921 = vmul.f32 %v86, %v899
    %v922 = vmul.f32 %v86, %v900
    %v923 = vmul.f32 %v87, %v901
    %v924 = vmul.f32 %v87, %v902
    %v925 = vmul.f32 %v88, %v903
    %v926 = vmul.f32 %v88, %v904
    %v927 = vmul.f32 %v89, %v905
    %v928 = vmul.f32 %v89, %v906
    %v929 = vmul.f32 %v90, %v907
    %v930 = vmul.f32 %v90, %v908
    %v931 = vmul.f32 %v91, %v909
    %v932 = vmul.f32 %v91, %v910
    %v933 = vmul.f32 %v92, %v911
    %v934 = vmul.f32 %v92, %v912
    %v935 = vmul.f32 %v93, %v913
    %v936 = vmul.f32 %v93, %v914
    %v937 = vmul.f32 %v94, %v915
    %v938 = vmul.f32 %v94, %v916
    %v939 = vmul.f32 %v95, %v917
    %v940 = vmul.f32 %v95, %v918
    %v941 = vadd.f32 %v757, %v919
    %v942 = vadd.f32 %v758, %v920
    %v943 = vadd.f32 %v759, %v921
    %v944 = vadd.f32 %v760, %v922
    %v945 = vadd.f32 %v761, %v923
    %v946 = vadd.f32 %v762, %v924
    %v947 = vadd.f32 %v763, %v925
    %v948 = vadd.f32 %v764, %v926
    %v949 = vadd.f32 %v765, %v927
    %v950 = vadd.f32 %v766, %v928
    %v951 = vadd.f32 %v767, %v929
    %v952 = vadd.f32 %v768, %v930
    %v953 = vadd.f32 %v769, %v931
    %v954 = vadd.f32 %v770, %v932
    %v955 = vadd.f32 %v771, %v933
    %v956 = vadd.f32 %v772, %v934
    %v957 = vadd.f32 %v773, %v935
    %v958 = vadd.f32 %v774, %v936
    %v959 = vadd.f32 %v775, %v937
    %v960 = vadd.f32 %v776, %v938
    %v961 = vadd.f32 %v777, %v939
    %v962 = vadd.f32 %v778, %v940
    %v963 = vld [vmem:[#allocation5] sm:$0x3]
    %v964 = vld [vmem:[#allocation5 + $0x2] sm:$0x3]
    %v965 = vld [vmem:[#allocation5 + $0x4] sm:$0x3]
    %v966 = vld [vmem:[#allocation5 + $0x6] sm:$0x3]
    %v967 = vld [vmem:[#allocation5 + $0x8] sm:$0x3]
    %v968 = vld [vmem:[#allocation5 + $0xa] sm:$0x3]
    %v969 = vld [vmem:[#allocation5 + $0xc] sm:$0x3]
    %v970 = vld [vmem:[#allocation5 + $0xe] sm:$0x3]
    %v971 = vld [vmem:[#allocation5 + $0x10] sm:$0x3]
    %v972 = vld [vmem:[#allocation5 + $0x12] sm:$0x3]
    %v973 = vld [vmem:[#allocation5 + $0x14] sm:$0x3]
    %v974 = vld [vmem:[#allocation5 + $0x16] sm:$0x3]
    %v975 = vld [vmem:[#allocation5 + $0x18] sm:$0x3]
    %v976 = vld [vmem:[#allocation5 + $0x1a] sm:$0x3]
    %v977 = vld [vmem:[#allocation5 + $0x1c] sm:$0x3]
    %v978 = vld [vmem:[#allocation5 + $0x1e] sm:$0x3]
    %v979 = vld [vmem:[#allocation5 + $0x20] sm:$0x3]
    %v980 = vld [vmem:[#allocation5 + $0x22] sm:$0x3]
    %v981 = vld [vmem:[#allocation5 + $0x24] sm:$0x3]
    %v982 = vld [vmem:[#allocation5 + $0x26] sm:$0x3]
    %v983 = vld [vmem:[#allocation5 + $0x28] sm:$0x3]
    %v984 = vld [vmem:[#allocation5 + $0x2a] sm:$0x3]
    %v985 = vld [vmem:[#allocation5 + $0x2c] sm:$0x3]
    %v986 = vld [vmem:[#allocation5 + $0x2e] sm:$0x3]
    %v995 = vlaneseq
    %v996 = vshrl.u32 %v995, 7
    %v997 = vsub.s32 0, %v996
    %v998 = vrot.slane %v963, %v997
    %v999 = vlaneseq
    %v1000 = vshrl.u32 %v999, 7
    %v1001 = vsub.s32 1, %v1000
    %v1002 = vrot.slane %v963, %v1001
    %v1003 = vlaneseq
    %v1004 = vshrl.u32 %v1003, 7
    %v1005 = vsub.s32 0, %v1004
    %v1006 = vrot.slane %v964, %v1005
    %v1007 = vlaneseq
    %v1008 = vshrl.u32 %v1007, 7
    %v1009 = vsub.s32 1, %v1008
    %v1010 = vrot.slane %v964, %v1009
    %v1011 = vlaneseq
    %v1012 = vshrl.u32 %v1011, 7
    %v1013 = vsub.s32 0, %v1012
    %v1014 = vrot.slane %v965, %v1013
    %v1015 = vlaneseq
    %v1016 = vshrl.u32 %v1015, 7
    %v1017 = vsub.s32 1, %v1016
    %v1018 = vrot.slane %v965, %v1017
    %v1019 = vlaneseq
    %v1020 = vshrl.u32 %v1019, 7
    %v1021 = vsub.s32 0, %v1020
    %v1022 = vrot.slane %v966, %v1021
    %v1023 = vlaneseq
    %v1024 = vshrl.u32 %v1023, 7
    %v1025 = vsub.s32 1, %v1024
    %v1026 = vrot.slane %v966, %v1025
    %v1027 = vlaneseq
    %v1028 = vshrl.u32 %v1027, 7
    %v1029 = vsub.s32 0, %v1028
    %v1030 = vrot.slane %v967, %v1029
    %v1031 = vlaneseq
    %v1032 = vshrl.u32 %v1031, 7
    %v1033 = vsub.s32 1, %v1032
    %v1034 = vrot.slane %v967, %v1033
    %v1035 = vlaneseq
    %v1036 = vshrl.u32 %v1035, 7
    %v1037 = vsub.s32 0, %v1036
    %v1038 = vrot.slane %v968, %v1037
    %v1039 = vlaneseq
    %v1040 = vshrl.u32 %v1039, 7
    %v1041 = vsub.s32 1, %v1040
    %v1042 = vrot.slane %v968, %v1041
    %v1043 = vlaneseq
    %v1044 = vshrl.u32 %v1043, 7
    %v1045 = vsub.s32 0, %v1044
    %v1046 = vrot.slane %v969, %v1045
    %v1047 = vlaneseq
    %v1048 = vshrl.u32 %v1047, 7
    %v1049 = vsub.s32 1, %v1048
    %v1050 = vrot.slane %v969, %v1049
    %v1051 = vlaneseq
    %v1052 = vshrl.u32 %v1051, 7
    %v1053 = vsub.s32 0, %v1052
    %v1054 = vrot.slane %v970, %v1053
    %v1055 = vlaneseq
    %v1056 = vshrl.u32 %v1055, 7
    %v1057 = vsub.s32 1, %v1056
    %v1058 = vrot.slane %v970, %v1057
    %v1075 = vsub.f32 %v595, %v998
    %v1076 = vsub.f32 %v596, %v1002
    %v1077 = vsub.f32 %v597, %v998
    %v1078 = vsub.f32 %v598, %v1002
    %v1079 = vsub.f32 %v599, %v998
    %v1080 = vsub.f32 %v600, %v1002
    %v1081 = vsub.f32 %v601, %v998
    %v1082 = vsub.f32 %v602, %v1002
    %v1083 = vsub.f32 %v603, %v998
    %v1084 = vsub.f32 %v604, %v1002
    %v1085 = vsub.f32 %v605, %v998
    %v1086 = vsub.f32 %v606, %v1002
    %v1087 = vsub.f32 %v607, %v998
    %v1088 = vsub.f32 %v608, %v1002
    %v1089 = vsub.f32 %v609, %v998
    %v1090 = vsub.f32 %v610, %v1002
    %v1091 = vsub.f32 %v611, %v998
    %v1092 = vsub.f32 %v612, %v1002
    %v1093 = vsub.f32 %v613, %v998
    %v1094 = vsub.f32 %v614, %v1002
    %v1095 = vsub.f32 %v615, %v998
    %v1096 = vsub.f32 %v616, %v1002
    %v1097 = vsub.f32 %v595, %v1006
    %v1098 = vsub.f32 %v596, %v1010
    %v1099 = vsub.f32 %v597, %v1006
    %v1100 = vsub.f32 %v598, %v1010
    %v1101 = vsub.f32 %v599, %v1006
    %v1102 = vsub.f32 %v600, %v1010
    %v1103 = vsub.f32 %v601, %v1006
    %v1104 = vsub.f32 %v602, %v1010
    %v1105 = vsub.f32 %v603, %v1006
    %v1106 = vsub.f32 %v604, %v1010
    %v1107 = vsub.f32 %v605, %v1006
    %v1108 = vsub.f32 %v606, %v1010
    %v1109 = vsub.f32 %v607, %v1006
    %v1110 = vsub.f32 %v608, %v1010
    %v1111 = vsub.f32 %v609, %v1006
    %v1112 = vsub.f32 %v610, %v1010
    %v1113 = vsub.f32 %v611, %v1006
    %v1114 = vsub.f32 %v612, %v1010
    %v1115 = vsub.f32 %v613, %v1006
    %v1116 = vsub.f32 %v614, %v1010
    %v1117 = vsub.f32 %v615, %v1006
    %v1118 = vsub.f32 %v616, %v1010
    %v1119 = vsub.f32 %v595, %v1014
    %v1120 = vsub.f32 %v596, %v1018
    %v1121 = vsub.f32 %v597, %v1014
    %v1122 = vsub.f32 %v598, %v1018
    %v1123 = vsub.f32 %v599, %v1014
    %v1124 = vsub.f32 %v600, %v1018
    %v1125 = vsub.f32 %v601, %v1014
    %v1126 = vsub.f32 %v602, %v1018
    %v1127 = vsub.f32 %v603, %v1014
    %v1128 = vsub.f32 %v604, %v1018
    %v1129 = vsub.f32 %v605, %v1014
    %v1130 = vsub.f32 %v606, %v1018
    %v1131 = vsub.f32 %v607, %v1014
    %v1132 = vsub.f32 %v608, %v1018
    %v1133 = vsub.f32 %v609, %v1014
    %v1134 = vsub.f32 %v610, %v1018
    %v1135 = vsub.f32 %v611, %v1014
    %v1136 = vsub.f32 %v612, %v1018
    %v1137 = vsub.f32 %v613, %v1014
    %v1138 = vsub.f32 %v614, %v1018
    %v1139 = vsub.f32 %v615, %v1014
    %v1140 = vsub.f32 %v616, %v1018
    %v1141 = vsub.f32 %v595, %v1022
    %v1142 = vsub.f32 %v596, %v1026
    %v1143 = vsub.f32 %v597, %v1022
    %v1144 = vsub.f32 %v598, %v1026
    %v1145 = vsub.f32 %v599, %v1022
    %v1146 = vsub.f32 %v600, %v1026
    %v1147 = vsub.f32 %v601, %v1022
    %v1148 = vsub.f32 %v602, %v1026
    %v1149 = vsub.f32 %v603, %v1022
    %v1150 = vsub.f32 %v604, %v1026
    %v1151 = vsub.f32 %v605, %v1022
    %v1152 = vsub.f32 %v606, %v1026
    %v1153 = vsub.f32 %v607, %v1022
    %v1154 = vsub.f32 %v608, %v1026
    %v1155 = vsub.f32 %v609, %v1022
    %v1156 = vsub.f32 %v610, %v1026
    %v1157 = vsub.f32 %v611, %v1022
    %v1158 = vsub.f32 %v612, %v1026
    %v1159 = vsub.f32 %v613, %v1022
    %v1160 = vsub.f32 %v614, %v1026
    %v1161 = vsub.f32 %v615, %v1022
    %v1162 = vsub.f32 %v616, %v1026
    %v1163 = vsub.f32 %v595, %v1030
    %v1164 = vsub.f32 %v596, %v1034
    %v1165 = vsub.f32 %v597, %v1030
    %v1166 = vsub.f32 %v598, %v1034
    %v1167 = vsub.f32 %v599, %v1030
    %v1168 = vsub.f32 %v600, %v1034
    %v1169 = vsub.f32 %v601, %v1030
    %v1170 = vsub.f32 %v602, %v1034
    %v1171 = vsub.f32 %v603, %v1030
    %v1172 = vsub.f32 %v604, %v1034
    %v1173 = vsub.f32 %v605, %v1030
    %v1174 = vsub.f32 %v606, %v1034
    %v1175 = vsub.f32 %v607, %v1030
    %v1176 = vsub.f32 %v608, %v1034
    %v1177 = vsub.f32 %v609, %v1030
    %v1178 = vsub.f32 %v610, %v1034
    %v1179 = vsub.f32 %v611, %v1030
    %v1180 = vsub.f32 %v612, %v1034
    %v1181 = vsub.f32 %v613, %v1030
    %v1182 = vsub.f32 %v614, %v1034
    %v1183 = vsub.f32 %v615, %v1030
    %v1184 = vsub.f32 %v616, %v1034
    %v1185 = vsub.f32 %v595, %v1038
    %v1186 = vsub.f32 %v596, %v1042
    %v1187 = vsub.f32 %v597, %v1038
    %v1188 = vsub.f32 %v598, %v1042
    %v1189 = vsub.f32 %v599, %v1038
    %v1190 = vsub.f32 %v600, %v1042
    %v1191 = vsub.f32 %v601, %v1038
    %v1192 = vsub.f32 %v602, %v1042
    %v1193 = vsub.f32 %v603, %v1038
    %v1194 = vsub.f32 %v604, %v1042
    %v1195 = vsub.f32 %v605, %v1038
    %v1196 = vsub.f32 %v606, %v1042
    %v1197 = vsub.f32 %v607, %v1038
    %v1198 = vsub.f32 %v608, %v1042
    %v1199 = vsub.f32 %v609, %v1038
    %v1200 = vsub.f32 %v610, %v1042
    %v1201 = vsub.f32 %v611, %v1038
    %v1202 = vsub.f32 %v612, %v1042
    %v1203 = vsub.f32 %v613, %v1038
    %v1204 = vsub.f32 %v614, %v1042
    %v1205 = vsub.f32 %v615, %v1038
    %v1206 = vsub.f32 %v616, %v1042
    %v1207 = vsub.f32 %v595, %v1046
    %v1208 = vsub.f32 %v596, %v1050
    %v1209 = vsub.f32 %v597, %v1046
    %v1210 = vsub.f32 %v598, %v1050
    %v1211 = vsub.f32 %v599, %v1046
    %v1212 = vsub.f32 %v600, %v1050
    %v1213 = vsub.f32 %v601, %v1046
    %v1214 = vsub.f32 %v602, %v1050
    %v1215 = vsub.f32 %v603, %v1046
    %v1216 = vsub.f32 %v604, %v1050
    %v1217 = vsub.f32 %v605, %v1046
    %v1218 = vsub.f32 %v606, %v1050
    %v1219 = vsub.f32 %v607, %v1046
    %v1220 = vsub.f32 %v608, %v1050
    %v1221 = vsub.f32 %v609, %v1046
    %v1222 = vsub.f32 %v610, %v1050
    %v1223 = vsub.f32 %v611, %v1046
    %v1224 = vsub.f32 %v612, %v1050
    %v1225 = vsub.f32 %v613, %v1046
    %v1226 = vsub.f32 %v614, %v1050
    %v1227 = vsub.f32 %v615, %v1046
    %v1228 = vsub.f32 %v616, %v1050
    %v1229 = vsub.f32 %v595, %v1054
    %v1230 = vsub.f32 %v596, %v1058
    %v1231 = vsub.f32 %v597, %v1054
    %v1232 = vsub.f32 %v598, %v1058
    %v1233 = vsub.f32 %v599, %v1054
    %v1234 = vsub.f32 %v600, %v1058
    %v1235 = vsub.f32 %v601, %v1054
    %v1236 = vsub.f32 %v602, %v1058
    %v1237 = vsub.f32 %v603, %v1054
    %v1238 = vsub.f32 %v604, %v1058
    %v1239 = vsub.f32 %v605, %v1054
    %v1240 = vsub.f32 %v606, %v1058
    %v1241 = vsub.f32 %v607, %v1054
    %v1242 = vsub.f32 %v608, %v1058
    %v1243 = vsub.f32 %v609, %v1054
    %v1244 = vsub.f32 %v610, %v1058
    %v1245 = vsub.f32 %v611, %v1054
    %v1246 = vsub.f32 %v612, %v1058
    %v1247 = vsub.f32 %v613, %v1054
    %v1248 = vsub.f32 %v614, %v1058
    %v1249 = vsub.f32 %v615, %v1054
    %v1250 = vsub.f32 %v616, %v1058
    %v1259 = vlaneseq
    %v1260 = vshrl.u32 %v1259, 7
    %v1261 = vsub.s32 0, %v1260
    %v1262 = vrot.slane %v971, %v1261
    %v1263 = vlaneseq
    %v1264 = vshrl.u32 %v1263, 7
    %v1265 = vsub.s32 1, %v1264
    %v1266 = vrot.slane %v971, %v1265
    %v1267 = vlaneseq
    %v1268 = vshrl.u32 %v1267, 7
    %v1269 = vsub.s32 0, %v1268
    %v1270 = vrot.slane %v972, %v1269
    %v1271 = vlaneseq
    %v1272 = vshrl.u32 %v1271, 7
    %v1273 = vsub.s32 1, %v1272
    %v1274 = vrot.slane %v972, %v1273
    %v1275 = vlaneseq
    %v1276 = vshrl.u32 %v1275, 7
    %v1277 = vsub.s32 0, %v1276
    %v1278 = vrot.slane %v973, %v1277
    %v1279 = vlaneseq
    %v1280 = vshrl.u32 %v1279, 7
    %v1281 = vsub.s32 1, %v1280
    %v1282 = vrot.slane %v973, %v1281
    %v1283 = vlaneseq
    %v1284 = vshrl.u32 %v1283, 7
    %v1285 = vsub.s32 0, %v1284
    %v1286 = vrot.slane %v974, %v1285
    %v1287 = vlaneseq
    %v1288 = vshrl.u32 %v1287, 7
    %v1289 = vsub.s32 1, %v1288
    %v1290 = vrot.slane %v974, %v1289
    %v1291 = vlaneseq
    %v1292 = vshrl.u32 %v1291, 7
    %v1293 = vsub.s32 0, %v1292
    %v1294 = vrot.slane %v975, %v1293
    %v1295 = vlaneseq
    %v1296 = vshrl.u32 %v1295, 7
    %v1297 = vsub.s32 1, %v1296
    %v1298 = vrot.slane %v975, %v1297
    %v1299 = vlaneseq
    %v1300 = vshrl.u32 %v1299, 7
    %v1301 = vsub.s32 0, %v1300
    %v1302 = vrot.slane %v976, %v1301
    %v1303 = vlaneseq
    %v1304 = vshrl.u32 %v1303, 7
    %v1305 = vsub.s32 1, %v1304
    %v1306 = vrot.slane %v976, %v1305
    %v1307 = vlaneseq
    %v1308 = vshrl.u32 %v1307, 7
    %v1309 = vsub.s32 0, %v1308
    %v1310 = vrot.slane %v977, %v1309
    %v1311 = vlaneseq
    %v1312 = vshrl.u32 %v1311, 7
    %v1313 = vsub.s32 1, %v1312
    %v1314 = vrot.slane %v977, %v1313
    %v1315 = vlaneseq
    %v1316 = vshrl.u32 %v1315, 7
    %v1317 = vsub.s32 0, %v1316
    %v1318 = vrot.slane %v978, %v1317
    %v1319 = vlaneseq
    %v1320 = vshrl.u32 %v1319, 7
    %v1321 = vsub.s32 1, %v1320
    %v1322 = vrot.slane %v978, %v1321
    %v1339 = vsub.f32 %v941, %v1262
    %v1340 = vsub.f32 %v942, %v1266
    %v1341 = vsub.f32 %v943, %v1262
    %v1342 = vsub.f32 %v944, %v1266
    %v1343 = vsub.f32 %v945, %v1262
    %v1344 = vsub.f32 %v946, %v1266
    %v1345 = vsub.f32 %v947, %v1262
    %v1346 = vsub.f32 %v948, %v1266
    %v1347 = vsub.f32 %v949, %v1262
    %v1348 = vsub.f32 %v950, %v1266
    %v1349 = vsub.f32 %v951, %v1262
    %v1350 = vsub.f32 %v952, %v1266
    %v1351 = vsub.f32 %v953, %v1262
    %v1352 = vsub.f32 %v954, %v1266
    %v1353 = vsub.f32 %v955, %v1262
    %v1354 = vsub.f32 %v956, %v1266
    %v1355 = vsub.f32 %v957, %v1262
    %v1356 = vsub.f32 %v958, %v1266
    %v1357 = vsub.f32 %v959, %v1262
    %v1358 = vsub.f32 %v960, %v1266
    %v1359 = vsub.f32 %v961, %v1262
    %v1360 = vsub.f32 %v962, %v1266
    %v1361 = vsub.f32 %v941, %v1270
    %v1362 = vsub.f32 %v942, %v1274
    %v1363 = vsub.f32 %v943, %v1270
    %v1364 = vsub.f32 %v944, %v1274
    %v1365 = vsub.f32 %v945, %v1270
    %v1366 = vsub.f32 %v946, %v1274
    %v1367 = vsub.f32 %v947, %v1270
    %v1368 = vsub.f32 %v948, %v1274
    %v1369 = vsub.f32 %v949, %v1270
    %v1370 = vsub.f32 %v950, %v1274
    %v1371 = vsub.f32 %v951, %v1270
    %v1372 = vsub.f32 %v952, %v1274
    %v1373 = vsub.f32 %v953, %v1270
    %v1374 = vsub.f32 %v954, %v1274
    %v1375 = vsub.f32 %v955, %v1270
    %v1376 = vsub.f32 %v956, %v1274
    %v1377 = vsub.f32 %v957, %v1270
    %v1378 = vsub.f32 %v958, %v1274
    %v1379 = vsub.f32 %v959, %v1270
    %v1380 = vsub.f32 %v960, %v1274
    %v1381 = vsub.f32 %v961, %v1270
    %v1382 = vsub.f32 %v962, %v1274
    %v1383 = vsub.f32 %v941, %v1278
    %v1384 = vsub.f32 %v942, %v1282
    %v1385 = vsub.f32 %v943, %v1278
    %v1386 = vsub.f32 %v944, %v1282
    %v1387 = vsub.f32 %v945, %v1278
    %v1388 = vsub.f32 %v946, %v1282
    %v1389 = vsub.f32 %v947, %v1278
    %v1390 = vsub.f32 %v948, %v1282
    %v1391 = vsub.f32 %v949, %v1278
    %v1392 = vsub.f32 %v950, %v1282
    %v1393 = vsub.f32 %v951, %v1278
    %v1394 = vsub.f32 %v952, %v1282
    %v1395 = vsub.f32 %v953, %v1278
    %v1396 = vsub.f32 %v954, %v1282
    %v1397 = vsub.f32 %v955, %v1278
    %v1398 = vsub.f32 %v956, %v1282
    %v1399 = vsub.f32 %v957, %v1278
    %v1400 = vsub.f32 %v958, %v1282
    %v1401 = vsub.f32 %v959, %v1278
    %v1402 = vsub.f32 %v960, %v1282
    %v1403 = vsub.f32 %v961, %v1278
    %v1404 = vsub.f32 %v962, %v1282
    %v1405 = vsub.f32 %v941, %v1286
    %v1406 = vsub.f32 %v942, %v1290
    %v1407 = vsub.f32 %v943, %v1286
    %v1408 = vsub.f32 %v944, %v1290
    %v1409 = vsub.f32 %v945, %v1286
    %v1410 = vsub.f32 %v946, %v1290
    %v1411 = vsub.f32 %v947, %v1286
    %v1412 = vsub.f32 %v948, %v1290
    %v1413 = vsub.f32 %v949, %v1286
    %v1414 = vsub.f32 %v950, %v1290
    %v1415 = vsub.f32 %v951, %v1286
    %v1416 = vsub.f32 %v952, %v1290
    %v1417 = vsub.f32 %v953, %v1286
    %v1418 = vsub.f32 %v954, %v1290
    %v1419 = vsub.f32 %v955, %v1286
    %v1420 = vsub.f32 %v956, %v1290
    %v1421 = vsub.f32 %v957, %v1286
    %v1422 = vsub.f32 %v958, %v1290
    %v1423 = vsub.f32 %v959, %v1286
    %v1424 = vsub.f32 %v960, %v1290
    %v1425 = vsub.f32 %v961, %v1286
    %v1426 = vsub.f32 %v962, %v1290
    %v1427 = vsub.f32 %v941, %v1294
    %v1428 = vsub.f32 %v942, %v1298
    %v1429 = vsub.f32 %v943, %v1294
    %v1430 = vsub.f32 %v944, %v1298
    %v1431 = vsub.f32 %v945, %v1294
    %v1432 = vsub.f32 %v946, %v1298
    %v1433 = vsub.f32 %v947, %v1294
    %v1434 = vsub.f32 %v948, %v1298
    %v1435 = vsub.f32 %v949, %v1294
    %v1436 = vsub.f32 %v950, %v1298
    %v1437 = vsub.f32 %v951, %v1294
    %v1438 = vsub.f32 %v952, %v1298
    %v1439 = vsub.f32 %v953, %v1294
    %v1440 = vsub.f32 %v954, %v1298
    %v1441 = vsub.f32 %v955, %v1294
    %v1442 = vsub.f32 %v956, %v1298
    %v1443 = vsub.f32 %v957, %v1294
    %v1444 = vsub.f32 %v958, %v1298
    %v1445 = vsub.f32 %v959, %v1294
    %v1446 = vsub.f32 %v960, %v1298
    %v1447 = vsub.f32 %v961, %v1294
    %v1448 = vsub.f32 %v962, %v1298
    %v1449 = vsub.f32 %v941, %v1302
    %v1450 = vsub.f32 %v942, %v1306
    %v1451 = vsub.f32 %v943, %v1302
    %v1452 = vsub.f32 %v944, %v1306
    %v1453 = vsub.f32 %v945, %v1302
    %v1454 = vsub.f32 %v946, %v1306
    %v1455 = vsub.f32 %v947, %v1302
    %v1456 = vsub.f32 %v948, %v1306
    %v1457 = vsub.f32 %v949, %v1302
    %v1458 = vsub.f32 %v950, %v1306
    %v1459 = vsub.f32 %v951, %v1302
    %v1460 = vsub.f32 %v952, %v1306
    %v1461 = vsub.f32 %v953, %v1302
    %v1462 = vsub.f32 %v954, %v1306
    %v1463 = vsub.f32 %v955, %v1302
    %v1464 = vsub.f32 %v956, %v1306
    %v1465 = vsub.f32 %v957, %v1302
    %v1466 = vsub.f32 %v958, %v1306
    %v1467 = vsub.f32 %v959, %v1302
    %v1468 = vsub.f32 %v960, %v1306
    %v1469 = vsub.f32 %v961, %v1302
    %v1470 = vsub.f32 %v962, %v1306
    %v1471 = vsub.f32 %v941, %v1310
    %v1472 = vsub.f32 %v942, %v1314
    %v1473 = vsub.f32 %v943, %v1310
    %v1474 = vsub.f32 %v944, %v1314
    %v1475 = vsub.f32 %v945, %v1310
    %v1476 = vsub.f32 %v946, %v1314
    %v1477 = vsub.f32 %v947, %v1310
    %v1478 = vsub.f32 %v948, %v1314
    %v1479 = vsub.f32 %v949, %v1310
    %v1480 = vsub.f32 %v950, %v1314
    %v1481 = vsub.f32 %v951, %v1310
    %v1482 = vsub.f32 %v952, %v1314
    %v1483 = vsub.f32 %v953, %v1310
    %v1484 = vsub.f32 %v954, %v1314
    %v1485 = vsub.f32 %v955, %v1310
    %v1486 = vsub.f32 %v956, %v1314
    %v1487 = vsub.f32 %v957, %v1310
    %v1488 = vsub.f32 %v958, %v1314
    %v1489 = vsub.f32 %v959, %v1310
    %v1490 = vsub.f32 %v960, %v1314
    %v1491 = vsub.f32 %v961, %v1310
    %v1492 = vsub.f32 %v962, %v1314
    %v1493 = vsub.f32 %v941, %v1318
    %v1494 = vsub.f32 %v942, %v1322
    %v1495 = vsub.f32 %v943, %v1318
    %v1496 = vsub.f32 %v944, %v1322
    %v1497 = vsub.f32 %v945, %v1318
    %v1498 = vsub.f32 %v946, %v1322
    %v1499 = vsub.f32 %v947, %v1318
    %v1500 = vsub.f32 %v948, %v1322
    %v1501 = vsub.f32 %v949, %v1318
    %v1502 = vsub.f32 %v950, %v1322
    %v1503 = vsub.f32 %v951, %v1318
    %v1504 = vsub.f32 %v952, %v1322
    %v1505 = vsub.f32 %v953, %v1318
    %v1506 = vsub.f32 %v954, %v1322
    %v1507 = vsub.f32 %v955, %v1318
    %v1508 = vsub.f32 %v956, %v1322
    %v1509 = vsub.f32 %v957, %v1318
    %v1510 = vsub.f32 %v958, %v1322
    %v1511 = vsub.f32 %v959, %v1318
    %v1512 = vsub.f32 %v960, %v1322
    %v1513 = vsub.f32 %v961, %v1318
    %v1514 = vsub.f32 %v962, %v1322
    %v1515 = vmul.f32 %v1075, %v1075
    %v1516 = vmul.f32 %v1076, %v1076
    %v1517 = vmul.f32 %v1077, %v1077
    %v1518 = vmul.f32 %v1078, %v1078
    %v1519 = vmul.f32 %v1079, %v1079
    %v1520 = vmul.f32 %v1080, %v1080
    %v1521 = vmul.f32 %v1081, %v1081
    %v1522 = vmul.f32 %v1082, %v1082
    %v1523 = vmul.f32 %v1083, %v1083
    %v1524 = vmul.f32 %v1084, %v1084
    %v1525 = vmul.f32 %v1085, %v1085
    %v1526 = vmul.f32 %v1086, %v1086
    %v1527 = vmul.f32 %v1087, %v1087
    %v1528 = vmul.f32 %v1088, %v1088
    %v1529 = vmul.f32 %v1089, %v1089
    %v1530 = vmul.f32 %v1090, %v1090
    %v1531 = vmul.f32 %v1091, %v1091
    %v1532 = vmul.f32 %v1092, %v1092
    %v1533 = vmul.f32 %v1093, %v1093
    %v1534 = vmul.f32 %v1094, %v1094
    %v1535 = vmul.f32 %v1095, %v1095
    %v1536 = vmul.f32 %v1096, %v1096
    %v1537 = vmul.f32 %v1097, %v1097
    %v1538 = vmul.f32 %v1098, %v1098
    %v1539 = vmul.f32 %v1099, %v1099
    %v1540 = vmul.f32 %v1100, %v1100
    %v1541 = vmul.f32 %v1101, %v1101
    %v1542 = vmul.f32 %v1102, %v1102
    %v1543 = vmul.f32 %v1103, %v1103
    %v1544 = vmul.f32 %v1104, %v1104
    %v1545 = vmul.f32 %v1105, %v1105
    %v1546 = vmul.f32 %v1106, %v1106
    %v1547 = vmul.f32 %v1107, %v1107
    %v1548 = vmul.f32 %v1108, %v1108
    %v1549 = vmul.f32 %v1109, %v1109
    %v1550 = vmul.f32 %v1110, %v1110
    %v1551 = vmul.f32 %v1111, %v1111
    %v1552 = vmul.f32 %v1112, %v1112
    %v1553 = vmul.f32 %v1113, %v1113
    %v1554 = vmul.f32 %v1114, %v1114
    %v1555 = vmul.f32 %v1115, %v1115
    %v1556 = vmul.f32 %v1116, %v1116
    %v1557 = vmul.f32 %v1117, %v1117
    %v1558 = vmul.f32 %v1118, %v1118
    %v1559 = vmul.f32 %v1119, %v1119
    %v1560 = vmul.f32 %v1120, %v1120
    %v1561 = vmul.f32 %v1121, %v1121
    %v1562 = vmul.f32 %v1122, %v1122
    %v1563 = vmul.f32 %v1123, %v1123
    %v1564 = vmul.f32 %v1124, %v1124
    %v1565 = vmul.f32 %v1125, %v1125
    %v1566 = vmul.f32 %v1126, %v1126
    %v1567 = vmul.f32 %v1127, %v1127
    %v1568 = vmul.f32 %v1128, %v1128
    %v1569 = vmul.f32 %v1129, %v1129
    %v1570 = vmul.f32 %v1130, %v1130
    %v1571 = vmul.f32 %v1131, %v1131
    %v1572 = vmul.f32 %v1132, %v1132
    %v1573 = vmul.f32 %v1133, %v1133
    %v1574 = vmul.f32 %v1134, %v1134
    %v1575 = vmul.f32 %v1135, %v1135
    %v1576 = vmul.f32 %v1136, %v1136
    %v1577 = vmul.f32 %v1137, %v1137
    %v1578 = vmul.f32 %v1138, %v1138
    %v1579 = vmul.f32 %v1139, %v1139
    %v1580 = vmul.f32 %v1140, %v1140
    %v1581 = vmul.f32 %v1141, %v1141
    %v1582 = vmul.f32 %v1142, %v1142
    %v1583 = vmul.f32 %v1143, %v1143
    %v1584 = vmul.f32 %v1144, %v1144
    %v1585 = vmul.f32 %v1145, %v1145
    %v1586 = vmul.f32 %v1146, %v1146
    %v1587 = vmul.f32 %v1147, %v1147
    %v1588 = vmul.f32 %v1148, %v1148
    %v1589 = vmul.f32 %v1149, %v1149
    %v1590 = vmul.f32 %v1150, %v1150
    %v1591 = vmul.f32 %v1151, %v1151
    %v1592 = vmul.f32 %v1152, %v1152
    %v1593 = vmul.f32 %v1153, %v1153
    %v1594 = vmul.f32 %v1154, %v1154
    %v1595 = vmul.f32 %v1155, %v1155
    %v1596 = vmul.f32 %v1156, %v1156
    %v1597 = vmul.f32 %v1157, %v1157
    %v1598 = vmul.f32 %v1158, %v1158
    %v1599 = vmul.f32 %v1159, %v1159
    %v1600 = vmul.f32 %v1160, %v1160
    %v1601 = vmul.f32 %v1161, %v1161
    %v1602 = vmul.f32 %v1162, %v1162
    %v1603 = vmul.f32 %v1163, %v1163
    %v1604 = vmul.f32 %v1164, %v1164
    %v1605 = vmul.f32 %v1165, %v1165
    %v1606 = vmul.f32 %v1166, %v1166
    %v1607 = vmul.f32 %v1167, %v1167
    %v1608 = vmul.f32 %v1168, %v1168
    %v1609 = vmul.f32 %v1169, %v1169
    %v1610 = vmul.f32 %v1170, %v1170
    %v1611 = vmul.f32 %v1171, %v1171
    %v1612 = vmul.f32 %v1172, %v1172
    %v1613 = vmul.f32 %v1173, %v1173
    %v1614 = vmul.f32 %v1174, %v1174
    %v1615 = vmul.f32 %v1175, %v1175
    %v1616 = vmul.f32 %v1176, %v1176
    %v1617 = vmul.f32 %v1177, %v1177
    %v1618 = vmul.f32 %v1178, %v1178
    %v1619 = vmul.f32 %v1179, %v1179
    %v1620 = vmul.f32 %v1180, %v1180
    %v1621 = vmul.f32 %v1181, %v1181
    %v1622 = vmul.f32 %v1182, %v1182
    %v1623 = vmul.f32 %v1183, %v1183
    %v1624 = vmul.f32 %v1184, %v1184
    %v1625 = vmul.f32 %v1185, %v1185
    %v1626 = vmul.f32 %v1186, %v1186
    %v1627 = vmul.f32 %v1187, %v1187
    %v1628 = vmul.f32 %v1188, %v1188
    %v1629 = vmul.f32 %v1189, %v1189
    %v1630 = vmul.f32 %v1190, %v1190
    %v1631 = vmul.f32 %v1191, %v1191
    %v1632 = vmul.f32 %v1192, %v1192
    %v1633 = vmul.f32 %v1193, %v1193
    %v1634 = vmul.f32 %v1194, %v1194
    %v1635 = vmul.f32 %v1195, %v1195
    %v1636 = vmul.f32 %v1196, %v1196
    %v1637 = vmul.f32 %v1197, %v1197
    %v1638 = vmul.f32 %v1198, %v1198
    %v1639 = vmul.f32 %v1199, %v1199
    %v1640 = vmul.f32 %v1200, %v1200
    %v1641 = vmul.f32 %v1201, %v1201
    %v1642 = vmul.f32 %v1202, %v1202
    %v1643 = vmul.f32 %v1203, %v1203
    %v1644 = vmul.f32 %v1204, %v1204
    %v1645 = vmul.f32 %v1205, %v1205
    %v1646 = vmul.f32 %v1206, %v1206
    %v1647 = vmul.f32 %v1207, %v1207
    %v1648 = vmul.f32 %v1208, %v1208
    %v1649 = vmul.f32 %v1209, %v1209
    %v1650 = vmul.f32 %v1210, %v1210
    %v1651 = vmul.f32 %v1211, %v1211
    %v1652 = vmul.f32 %v1212, %v1212
    %v1653 = vmul.f32 %v1213, %v1213
    %v1654 = vmul.f32 %v1214, %v1214
    %v1655 = vmul.f32 %v1215, %v1215
    %v1656 = vmul.f32 %v1216, %v1216
    %v1657 = vmul.f32 %v1217, %v1217
    %v1658 = vmul.f32 %v1218, %v1218
    %v1659 = vmul.f32 %v1219, %v1219
    %v1660 = vmul.f32 %v1220, %v1220
    %v1661 = vmul.f32 %v1221, %v1221
    %v1662 = vmul.f32 %v1222, %v1222
    %v1663 = vmul.f32 %v1223, %v1223
    %v1664 = vmul.f32 %v1224, %v1224
    %v1665 = vmul.f32 %v1225, %v1225
    %v1666 = vmul.f32 %v1226, %v1226
    %v1667 = vmul.f32 %v1227, %v1227
    %v1668 = vmul.f32 %v1228, %v1228
    %v1669 = vmul.f32 %v1229, %v1229
    %v1670 = vmul.f32 %v1230, %v1230
    %v1671 = vmul.f32 %v1231, %v1231
    %v1672 = vmul.f32 %v1232, %v1232
    %v1673 = vmul.f32 %v1233, %v1233
    %v1674 = vmul.f32 %v1234, %v1234
    %v1675 = vmul.f32 %v1235, %v1235
    %v1676 = vmul.f32 %v1236, %v1236
    %v1677 = vmul.f32 %v1237, %v1237
    %v1678 = vmul.f32 %v1238, %v1238
    %v1679 = vmul.f32 %v1239, %v1239
    %v1680 = vmul.f32 %v1240, %v1240
    %v1681 = vmul.f32 %v1241, %v1241
    %v1682 = vmul.f32 %v1242, %v1242
    %v1683 = vmul.f32 %v1243, %v1243
    %v1684 = vmul.f32 %v1244, %v1244
    %v1685 = vmul.f32 %v1245, %v1245
    %v1686 = vmul.f32 %v1246, %v1246
    %v1687 = vmul.f32 %v1247, %v1247
    %v1688 = vmul.f32 %v1248, %v1248
    %v1689 = vmul.f32 %v1249, %v1249
    %v1690 = vmul.f32 %v1250, %v1250
    %v1691 = vmul.f32 %v1339, %v1339
    %v1692 = vmul.f32 %v1340, %v1340
    %v1693 = vmul.f32 %v1341, %v1341
    %v1694 = vmul.f32 %v1342, %v1342
    %v1695 = vmul.f32 %v1343, %v1343
    %v1696 = vmul.f32 %v1344, %v1344
    %v1697 = vmul.f32 %v1345, %v1345
    %v1698 = vmul.f32 %v1346, %v1346
    %v1699 = vmul.f32 %v1347, %v1347
    %v1700 = vmul.f32 %v1348, %v1348
    %v1701 = vmul.f32 %v1349, %v1349
    %v1702 = vmul.f32 %v1350, %v1350
    %v1703 = vmul.f32 %v1351, %v1351
    %v1704 = vmul.f32 %v1352, %v1352
    %v1705 = vmul.f32 %v1353, %v1353
    %v1706 = vmul.f32 %v1354, %v1354
    %v1707 = vmul.f32 %v1355, %v1355
    %v1708 = vmul.f32 %v1356, %v1356
    %v1709 = vmul.f32 %v1357, %v1357
    %v1710 = vmul.f32 %v1358, %v1358
    %v1711 = vmul.f32 %v1359, %v1359
    %v1712 = vmul.f32 %v1360, %v1360
    %v1713 = vmul.f32 %v1361, %v1361
    %v1714 = vmul.f32 %v1362, %v1362
    %v1715 = vmul.f32 %v1363, %v1363
    %v1716 = vmul.f32 %v1364, %v1364
    %v1717 = vmul.f32 %v1365, %v1365
    %v1718 = vmul.f32 %v1366, %v1366
    %v1719 = vmul.f32 %v1367, %v1367
    %v1720 = vmul.f32 %v1368, %v1368
    %v1721 = vmul.f32 %v1369, %v1369
    %v1722 = vmul.f32 %v1370, %v1370
    %v1723 = vmul.f32 %v1371, %v1371
    %v1724 = vmul.f32 %v1372, %v1372
    %v1725 = vmul.f32 %v1373, %v1373
    %v1726 = vmul.f32 %v1374, %v1374
    %v1727 = vmul.f32 %v1375, %v1375
    %v1728 = vmul.f32 %v1376, %v1376
    %v1729 = vmul.f32 %v1377, %v1377
    %v1730 = vmul.f32 %v1378, %v1378
    %v1731 = vmul.f32 %v1379, %v1379
    %v1732 = vmul.f32 %v1380, %v1380
    %v1733 = vmul.f32 %v1381, %v1381
    %v1734 = vmul.f32 %v1382, %v1382
    %v1735 = vmul.f32 %v1383, %v1383
    %v1736 = vmul.f32 %v1384, %v1384
    %v1737 = vmul.f32 %v1385, %v1385
    %v1738 = vmul.f32 %v1386, %v1386
    %v1739 = vmul.f32 %v1387, %v1387
    %v1740 = vmul.f32 %v1388, %v1388
    %v1741 = vmul.f32 %v1389, %v1389
    %v1742 = vmul.f32 %v1390, %v1390
    %v1743 = vmul.f32 %v1391, %v1391
    %v1744 = vmul.f32 %v1392, %v1392
    %v1745 = vmul.f32 %v1393, %v1393
    %v1746 = vmul.f32 %v1394, %v1394
    %v1747 = vmul.f32 %v1395, %v1395
    %v1748 = vmul.f32 %v1396, %v1396
    %v1749 = vmul.f32 %v1397, %v1397
    %v1750 = vmul.f32 %v1398, %v1398
    %v1751 = vmul.f32 %v1399, %v1399
    %v1752 = vmul.f32 %v1400, %v1400
    %v1753 = vmul.f32 %v1401, %v1401
    %v1754 = vmul.f32 %v1402, %v1402
    %v1755 = vmul.f32 %v1403, %v1403
    %v1756 = vmul.f32 %v1404, %v1404
    %v1757 = vmul.f32 %v1405, %v1405
    %v1758 = vmul.f32 %v1406, %v1406
    %v1759 = vmul.f32 %v1407, %v1407
    %v1760 = vmul.f32 %v1408, %v1408
    %v1761 = vmul.f32 %v1409, %v1409
    %v1762 = vmul.f32 %v1410, %v1410
    %v1763 = vmul.f32 %v1411, %v1411
    %v1764 = vmul.f32 %v1412, %v1412
    %v1765 = vmul.f32 %v1413, %v1413
    %v1766 = vmul.f32 %v1414, %v1414
    %v1767 = vmul.f32 %v1415, %v1415
    %v1768 = vmul.f32 %v1416, %v1416
    %v1769 = vmul.f32 %v1417, %v1417
    %v1770 = vmul.f32 %v1418, %v1418
    %v1771 = vmul.f32 %v1419, %v1419
    %v1772 = vmul.f32 %v1420, %v1420
    %v1773 = vmul.f32 %v1421, %v1421
    %v1774 = vmul.f32 %v1422, %v1422
    %v1775 = vmul.f32 %v1423, %v1423
    %v1776 = vmul.f32 %v1424, %v1424
    %v1777 = vmul.f32 %v1425, %v1425
    %v1778 = vmul.f32 %v1426, %v1426
    %v1779 = vmul.f32 %v1427, %v1427
    %v1780 = vmul.f32 %v1428, %v1428
    %v1781 = vmul.f32 %v1429, %v1429
    %v1782 = vmul.f32 %v1430, %v1430
    %v1783 = vmul.f32 %v1431, %v1431
    %v1784 = vmul.f32 %v1432, %v1432
    %v1785 = vmul.f32 %v1433, %v1433
    %v1786 = vmul.f32 %v1434, %v1434
    %v1787 = vmul.f32 %v1435, %v1435
    %v1788 = vmul.f32 %v1436, %v1436
    %v1789 = vmul.f32 %v1437, %v1437
    %v1790 = vmul.f32 %v1438, %v1438
    %v1791 = vmul.f32 %v1439, %v1439
    %v1792 = vmul.f32 %v1440, %v1440
    %v1793 = vmul.f32 %v1441, %v1441
    %v1794 = vmul.f32 %v1442, %v1442
    %v1795 = vmul.f32 %v1443, %v1443
    %v1796 = vmul.f32 %v1444, %v1444
    %v1797 = vmul.f32 %v1445, %v1445
    %v1798 = vmul.f32 %v1446, %v1446
    %v1799 = vmul.f32 %v1447, %v1447
    %v1800 = vmul.f32 %v1448, %v1448
    %v1801 = vmul.f32 %v1449, %v1449
    %v1802 = vmul.f32 %v1450, %v1450
    %v1803 = vmul.f32 %v1451, %v1451
    %v1804 = vmul.f32 %v1452, %v1452
    %v1805 = vmul.f32 %v1453, %v1453
    %v1806 = vmul.f32 %v1454, %v1454
    %v1807 = vmul.f32 %v1455, %v1455
    %v1808 = vmul.f32 %v1456, %v1456
    %v1809 = vmul.f32 %v1457, %v1457
    %v1810 = vmul.f32 %v1458, %v1458
    %v1811 = vmul.f32 %v1459, %v1459
    %v1812 = vmul.f32 %v1460, %v1460
    %v1813 = vmul.f32 %v1461, %v1461
    %v1814 = vmul.f32 %v1462, %v1462
    %v1815 = vmul.f32 %v1463, %v1463
    %v1816 = vmul.f32 %v1464, %v1464
    %v1817 = vmul.f32 %v1465, %v1465
    %v1818 = vmul.f32 %v1466, %v1466
    %v1819 = vmul.f32 %v1467, %v1467
    %v1820 = vmul.f32 %v1468, %v1468
    %v1821 = vmul.f32 %v1469, %v1469
    %v1822 = vmul.f32 %v1470, %v1470
    %v1823 = vmul.f32 %v1471, %v1471
    %v1824 = vmul.f32 %v1472, %v1472
    %v1825 = vmul.f32 %v1473, %v1473
    %v1826 = vmul.f32 %v1474, %v1474
    %v1827 = vmul.f32 %v1475, %v1475
    %v1828 = vmul.f32 %v1476, %v1476
    %v1829 = vmul.f32 %v1477, %v1477
    %v1830 = vmul.f32 %v1478, %v1478
    %v1831 = vmul.f32 %v1479, %v1479
    %v1832 = vmul.f32 %v1480, %v1480
    %v1833 = vmul.f32 %v1481, %v1481
    %v1834 = vmul.f32 %v1482, %v1482
    %v1835 = vmul.f32 %v1483, %v1483
    %v1836 = vmul.f32 %v1484, %v1484
    %v1837 = vmul.f32 %v1485, %v1485
    %v1838 = vmul.f32 %v1486, %v1486
    %v1839 = vmul.f32 %v1487, %v1487
    %v1840 = vmul.f32 %v1488, %v1488
    %v1841 = vmul.f32 %v1489, %v1489
    %v1842 = vmul.f32 %v1490, %v1490
    %v1843 = vmul.f32 %v1491, %v1491
    %v1844 = vmul.f32 %v1492, %v1492
    %v1845 = vmul.f32 %v1493, %v1493
    %v1846 = vmul.f32 %v1494, %v1494
    %v1847 = vmul.f32 %v1495, %v1495
    %v1848 = vmul.f32 %v1496, %v1496
    %v1849 = vmul.f32 %v1497, %v1497
    %v1850 = vmul.f32 %v1498, %v1498
    %v1851 = vmul.f32 %v1499, %v1499
    %v1852 = vmul.f32 %v1500, %v1500
    %v1853 = vmul.f32 %v1501, %v1501
    %v1854 = vmul.f32 %v1502, %v1502
    %v1855 = vmul.f32 %v1503, %v1503
    %v1856 = vmul.f32 %v1504, %v1504
    %v1857 = vmul.f32 %v1505, %v1505
    %v1858 = vmul.f32 %v1506, %v1506
    %v1859 = vmul.f32 %v1507, %v1507
    %v1860 = vmul.f32 %v1508, %v1508
    %v1861 = vmul.f32 %v1509, %v1509
    %v1862 = vmul.f32 %v1510, %v1510
    %v1863 = vmul.f32 %v1511, %v1511
    %v1864 = vmul.f32 %v1512, %v1512
    %v1865 = vmul.f32 %v1513, %v1513
    %v1866 = vmul.f32 %v1514, %v1514
    %v1867 = vadd.f32 %v1515, %v1691
    %v1868 = vadd.f32 %v1516, %v1692
    %v1869 = vadd.f32 %v1517, %v1693
    %v1870 = vadd.f32 %v1518, %v1694
    %v1871 = vadd.f32 %v1519, %v1695
    %v1872 = vadd.f32 %v1520, %v1696
    %v1873 = vadd.f32 %v1521, %v1697
    %v1874 = vadd.f32 %v1522, %v1698
    %v1875 = vadd.f32 %v1523, %v1699
    %v1876 = vadd.f32 %v1524, %v1700
    %v1877 = vadd.f32 %v1525, %v1701
    %v1878 = vadd.f32 %v1526, %v1702
    %v1879 = vadd.f32 %v1527, %v1703
    %v1880 = vadd.f32 %v1528, %v1704
    %v1881 = vadd.f32 %v1529, %v1705
    %v1882 = vadd.f32 %v1530, %v1706
    %v1883 = vadd.f32 %v1531, %v1707
    %v1884 = vadd.f32 %v1532, %v1708
    %v1885 = vadd.f32 %v1533, %v1709
    %v1886 = vadd.f32 %v1534, %v1710
    %v1887 = vadd.f32 %v1535, %v1711
    %v1888 = vadd.f32 %v1536, %v1712
    %v1889 = vadd.f32 %v1537, %v1713
    %v1890 = vadd.f32 %v1538, %v1714
    %v1891 = vadd.f32 %v1539, %v1715
    %v1892 = vadd.f32 %v1540, %v1716
    %v1893 = vadd.f32 %v1541, %v1717
    %v1894 = vadd.f32 %v1542, %v1718
    %v1895 = vadd.f32 %v1543, %v1719
    %v1896 = vadd.f32 %v1544, %v1720
    %v1897 = vadd.f32 %v1545, %v1721
    %v1898 = vadd.f32 %v1546, %v1722
    %v1899 = vadd.f32 %v1547, %v1723
    %v1900 = vadd.f32 %v1548, %v1724
    %v1901 = vadd.f32 %v1549, %v1725
    %v1902 = vadd.f32 %v1550, %v1726
    %v1903 = vadd.f32 %v1551, %v1727
    %v1904 = vadd.f32 %v1552, %v1728
    %v1905 = vadd.f32 %v1553, %v1729
    %v1906 = vadd.f32 %v1554, %v1730
    %v1907 = vadd.f32 %v1555, %v1731
    %v1908 = vadd.f32 %v1556, %v1732
    %v1909 = vadd.f32 %v1557, %v1733
    %v1910 = vadd.f32 %v1558, %v1734
    %v1911 = vadd.f32 %v1559, %v1735
    %v1912 = vadd.f32 %v1560, %v1736
    %v1913 = vadd.f32 %v1561, %v1737
    %v1914 = vadd.f32 %v1562, %v1738
    %v1915 = vadd.f32 %v1563, %v1739
    %v1916 = vadd.f32 %v1564, %v1740
    %v1917 = vadd.f32 %v1565, %v1741
    %v1918 = vadd.f32 %v1566, %v1742
    %v1919 = vadd.f32 %v1567, %v1743
    %v1920 = vadd.f32 %v1568, %v1744
    %v1921 = vadd.f32 %v1569, %v1745
    %v1922 = vadd.f32 %v1570, %v1746
    %v1923 = vadd.f32 %v1571, %v1747
    %v1924 = vadd.f32 %v1572, %v1748
    %v1925 = vadd.f32 %v1573, %v1749
    %v1926 = vadd.f32 %v1574, %v1750
    %v1927 = vadd.f32 %v1575, %v1751
    %v1928 = vadd.f32 %v1576, %v1752
    %v1929 = vadd.f32 %v1577, %v1753
    %v1930 = vadd.f32 %v1578, %v1754
    %v1931 = vadd.f32 %v1579, %v1755
    %v1932 = vadd.f32 %v1580, %v1756
    %v1933 = vadd.f32 %v1581, %v1757
    %v1934 = vadd.f32 %v1582, %v1758
    %v1935 = vadd.f32 %v1583, %v1759
    %v1936 = vadd.f32 %v1584, %v1760
    %v1937 = vadd.f32 %v1585, %v1761
    %v1938 = vadd.f32 %v1586, %v1762
    %v1939 = vadd.f32 %v1587, %v1763
    %v1940 = vadd.f32 %v1588, %v1764
    %v1941 = vadd.f32 %v1589, %v1765
    %v1942 = vadd.f32 %v1590, %v1766
    %v1943 = vadd.f32 %v1591, %v1767
    %v1944 = vadd.f32 %v1592, %v1768
    %v1945 = vadd.f32 %v1593, %v1769
    %v1946 = vadd.f32 %v1594, %v1770
    %v1947 = vadd.f32 %v1595, %v1771
    %v1948 = vadd.f32 %v1596, %v1772
    %v1949 = vadd.f32 %v1597, %v1773
    %v1950 = vadd.f32 %v1598, %v1774
    %v1951 = vadd.f32 %v1599, %v1775
    %v1952 = vadd.f32 %v1600, %v1776
    %v1953 = vadd.f32 %v1601, %v1777
    %v1954 = vadd.f32 %v1602, %v1778
    %v1955 = vadd.f32 %v1603, %v1779
    %v1956 = vadd.f32 %v1604, %v1780
    %v1957 = vadd.f32 %v1605, %v1781
    %v1958 = vadd.f32 %v1606, %v1782
    %v1959 = vadd.f32 %v1607, %v1783
    %v1960 = vadd.f32 %v1608, %v1784
    %v1961 = vadd.f32 %v1609, %v1785
    %v1962 = vadd.f32 %v1610, %v1786
    %v1963 = vadd.f32 %v1611, %v1787
    %v1964 = vadd.f32 %v1612, %v1788
    %v1965 = vadd.f32 %v1613, %v1789
    %v1966 = vadd.f32 %v1614, %v1790
    %v1967 = vadd.f32 %v1615, %v1791
    %v1968 = vadd.f32 %v1616, %v1792
    %v1969 = vadd.f32 %v1617, %v1793
    %v1970 = vadd.f32 %v1618, %v1794
    %v1971 = vadd.f32 %v1619, %v1795
    %v1972 = vadd.f32 %v1620, %v1796
    %v1973 = vadd.f32 %v1621, %v1797
    %v1974 = vadd.f32 %v1622, %v1798
    %v1975 = vadd.f32 %v1623, %v1799
    %v1976 = vadd.f32 %v1624, %v1800
    %v1977 = vadd.f32 %v1625, %v1801
    %v1978 = vadd.f32 %v1626, %v1802
    %v1979 = vadd.f32 %v1627, %v1803
    %v1980 = vadd.f32 %v1628, %v1804
    %v1981 = vadd.f32 %v1629, %v1805
    %v1982 = vadd.f32 %v1630, %v1806
    %v1983 = vadd.f32 %v1631, %v1807
    %v1984 = vadd.f32 %v1632, %v1808
    %v1985 = vadd.f32 %v1633, %v1809
    %v1986 = vadd.f32 %v1634, %v1810
    %v1987 = vadd.f32 %v1635, %v1811
    %v1988 = vadd.f32 %v1636, %v1812
    %v1989 = vadd.f32 %v1637, %v1813
    %v1990 = vadd.f32 %v1638, %v1814
    %v1991 = vadd.f32 %v1639, %v1815
    %v1992 = vadd.f32 %v1640, %v1816
    %v1993 = vadd.f32 %v1641, %v1817
    %v1994 = vadd.f32 %v1642, %v1818
    %v1995 = vadd.f32 %v1643, %v1819
    %v1996 = vadd.f32 %v1644, %v1820
    %v1997 = vadd.f32 %v1645, %v1821
    %v1998 = vadd.f32 %v1646, %v1822
    %v1999 = vadd.f32 %v1647, %v1823
    %v2000 = vadd.f32 %v1648, %v1824
    %v2001 = vadd.f32 %v1649, %v1825
    %v2002 = vadd.f32 %v1650, %v1826
    %v2003 = vadd.f32 %v1651, %v1827
    %v2004 = vadd.f32 %v1652, %v1828
    %v2005 = vadd.f32 %v1653, %v1829
    %v2006 = vadd.f32 %v1654, %v1830
    %v2007 = vadd.f32 %v1655, %v1831
    %v2008 = vadd.f32 %v1656, %v1832
    %v2009 = vadd.f32 %v1657, %v1833
    %v2010 = vadd.f32 %v1658, %v1834
    %v2011 = vadd.f32 %v1659, %v1835
    %v2012 = vadd.f32 %v1660, %v1836
    %v2013 = vadd.f32 %v1661, %v1837
    %v2014 = vadd.f32 %v1662, %v1838
    %v2015 = vadd.f32 %v1663, %v1839
    %v2016 = vadd.f32 %v1664, %v1840
    %v2017 = vadd.f32 %v1665, %v1841
    %v2018 = vadd.f32 %v1666, %v1842
    %v2019 = vadd.f32 %v1667, %v1843
    %v2020 = vadd.f32 %v1668, %v1844
    %v2021 = vadd.f32 %v1669, %v1845
    %v2022 = vadd.f32 %v1670, %v1846
    %v2023 = vadd.f32 %v1671, %v1847
    %v2024 = vadd.f32 %v1672, %v1848
    %v2025 = vadd.f32 %v1673, %v1849
    %v2026 = vadd.f32 %v1674, %v1850
    %v2027 = vadd.f32 %v1675, %v1851
    %v2028 = vadd.f32 %v1676, %v1852
    %v2029 = vadd.f32 %v1677, %v1853
    %v2030 = vadd.f32 %v1678, %v1854
    %v2031 = vadd.f32 %v1679, %v1855
    %v2032 = vadd.f32 %v1680, %v1856
    %v2033 = vadd.f32 %v1681, %v1857
    %v2034 = vadd.f32 %v1682, %v1858
    %v2035 = vadd.f32 %v1683, %v1859
    %v2036 = vadd.f32 %v1684, %v1860
    %v2037 = vadd.f32 %v1685, %v1861
    %v2038 = vadd.f32 %v1686, %v1862
    %v2039 = vadd.f32 %v1687, %v1863
    %v2040 = vadd.f32 %v1688, %v1864
    %v2041 = vadd.f32 %v1689, %v1865
    %v2042 = vadd.f32 %v1690, %v1866
    %v2043 = vmin.f32 %v1867, %v1869
    %v2044 = vmin.f32 %v2043, %v1871
    %v2045 = vmin.f32 %v2044, %v1873
    %v2046 = vmin.f32 %v2045, %v1875
    %v2047 = vmin.f32 %v2046, %v1877
    %v2048 = vmin.f32 %v2047, %v1879
    %v2049 = vmin.f32 %v2048, %v1881
    %v2050 = vmin.f32 %v2049, %v1883
    %v2051 = vmin.f32 %v2050, %v1885
    %v2052 = vmin.f32 %v2051, %v1887
    %v2053 = vrot.slane %v2052, 4
    %v2054 = vmin.f32 %v2052, %v2053
    %v2055 = vrot.slane %v2054, 2
    %v2056 = vmin.f32 %v2054, %v2055
    %v2057 = vrot.slane %v2056, 1
    %v2058 = vmin.f32 %v2056, %v2057
    %v2059 = vmin.f32 %v1868, %v1870
    %v2060 = vmin.f32 %v2059, %v1872
    %v2061 = vmin.f32 %v2060, %v1874
    %v2062 = vmin.f32 %v2061, %v1876
    %v2063 = vmin.f32 %v2062, %v1878
    %v2064 = vmin.f32 %v2063, %v1880
    %v2065 = vmin.f32 %v2064, %v1882
    %v2066 = vmin.f32 %v2065, %v1884
    %v2067 = vmin.f32 %v2066, %v1886
    %v2068 = vmin.f32 %v2067, %v1888
    %v2069 = vrot.slane %v2068, 4
    %v2070 = vmin.f32 %v2068, %v2069
    %v2071 = vrot.slane %v2070, 2
    %v2072 = vmin.f32 %v2070, %v2071
    %v2073 = vrot.slane %v2072, 1
    %v2074 = vmin.f32 %v2072, %v2073
    %v2075 = vmin.f32 %v1889, %v1891
    %v2076 = vmin.f32 %v2075, %v1893
    %v2077 = vmin.f32 %v2076, %v1895
    %v2078 = vmin.f32 %v2077, %v1897
    %v2079 = vmin.f32 %v2078, %v1899
    %v2080 = vmin.f32 %v2079, %v1901
    %v2081 = vmin.f32 %v2080, %v1903
    %v2082 = vmin.f32 %v2081, %v1905
    %v2083 = vmin.f32 %v2082, %v1907
    %v2084 = vmin.f32 %v2083, %v1909
    %v2085 = vrot.slane %v2084, 4
    %v2086 = vmin.f32 %v2084, %v2085
    %v2087 = vrot.slane %v2086, 2
    %v2088 = vmin.f32 %v2086, %v2087
    %v2089 = vrot.slane %v2088, 1
    %v2090 = vmin.f32 %v2088, %v2089
    %v2091 = vmin.f32 %v1890, %v1892
    %v2092 = vmin.f32 %v2091, %v1894
    %v2093 = vmin.f32 %v2092, %v1896
    %v2094 = vmin.f32 %v2093, %v1898
    %v2095 = vmin.f32 %v2094, %v1900
    %v2096 = vmin.f32 %v2095, %v1902
    %v2097 = vmin.f32 %v2096, %v1904
    %v2098 = vmin.f32 %v2097, %v1906
    %v2099 = vmin.f32 %v2098, %v1908
    %v2100 = vmin.f32 %v2099, %v1910
    %v2101 = vrot.slane %v2100, 4
    %v2102 = vmin.f32 %v2100, %v2101
    %v2103 = vrot.slane %v2102, 2
    %v2104 = vmin.f32 %v2102, %v2103
    %v2105 = vrot.slane %v2104, 1
    %v2106 = vmin.f32 %v2104, %v2105
    %v2107 = vmin.f32 %v1911, %v1913
    %v2108 = vmin.f32 %v2107, %v1915
    %v2109 = vmin.f32 %v2108, %v1917
    %v2110 = vmin.f32 %v2109, %v1919
    %v2111 = vmin.f32 %v2110, %v1921
    %v2112 = vmin.f32 %v2111, %v1923
    %v2113 = vmin.f32 %v2112, %v1925
    %v2114 = vmin.f32 %v2113, %v1927
    %v2115 = vmin.f32 %v2114, %v1929
    %v2116 = vmin.f32 %v2115, %v1931
    %v2117 = vrot.slane %v2116, 4
    %v2118 = vmin.f32 %v2116, %v2117
    %v2119 = vrot.slane %v2118, 2
    %v2120 = vmin.f32 %v2118, %v2119
    %v2121 = vrot.slane %v2120, 1
    %v2122 = vmin.f32 %v2120, %v2121
    %v2123 = vmin.f32 %v1912, %v1914
    %v2124 = vmin.f32 %v2123, %v1916
    %v2125 = vmin.f32 %v2124, %v1918
    %v2126 = vmin.f32 %v2125, %v1920
    %v2127 = vmin.f32 %v2126, %v1922
    %v2128 = vmin.f32 %v2127, %v1924
    %v2129 = vmin.f32 %v2128, %v1926
    %v2130 = vmin.f32 %v2129, %v1928
    %v2131 = vmin.f32 %v2130, %v1930
    %v2132 = vmin.f32 %v2131, %v1932
    %v2133 = vrot.slane %v2132, 4
    %v2134 = vmin.f32 %v2132, %v2133
    %v2135 = vrot.slane %v2134, 2
    %v2136 = vmin.f32 %v2134, %v2135
    %v2137 = vrot.slane %v2136, 1
    %v2138 = vmin.f32 %v2136, %v2137
    %v2139 = vmin.f32 %v1933, %v1935
    %v2140 = vmin.f32 %v2139, %v1937
    %v2141 = vmin.f32 %v2140, %v1939
    %v2142 = vmin.f32 %v2141, %v1941
    %v2143 = vmin.f32 %v2142, %v1943
    %v2144 = vmin.f32 %v2143, %v1945
    %v2145 = vmin.f32 %v2144, %v1947
    %v2146 = vmin.f32 %v2145, %v1949
    %v2147 = vmin.f32 %v2146, %v1951
    %v2148 = vmin.f32 %v2147, %v1953
    %v2149 = vrot.slane %v2148, 4
    %v2150 = vmin.f32 %v2148, %v2149
    %v2151 = vrot.slane %v2150, 2
    %v2152 = vmin.f32 %v2150, %v2151
    %v2153 = vrot.slane %v2152, 1
    %v2154 = vmin.f32 %v2152, %v2153
    %v2155 = vmin.f32 %v1934, %v1936
    %v2156 = vmin.f32 %v2155, %v1938
    %v2157 = vmin.f32 %v2156, %v1940
    %v2158 = vmin.f32 %v2157, %v1942
    %v2159 = vmin.f32 %v2158, %v1944
    %v2160 = vmin.f32 %v2159, %v1946
    %v2161 = vmin.f32 %v2160, %v1948
    %v2162 = vmin.f32 %v2161, %v1950
    %v2163 = vmin.f32 %v2162, %v1952
    %v2164 = vmin.f32 %v2163, %v1954
    %v2165 = vrot.slane %v2164, 4
    %v2166 = vmin.f32 %v2164, %v2165
    %v2167 = vrot.slane %v2166, 2
    %v2168 = vmin.f32 %v2166, %v2167
    %v2169 = vrot.slane %v2168, 1
    %v2170 = vmin.f32 %v2168, %v2169
    %v2171 = vmin.f32 %v1955, %v1957
    %v2172 = vmin.f32 %v2171, %v1959
    %v2173 = vmin.f32 %v2172, %v1961
    %v2174 = vmin.f32 %v2173, %v1963
    %v2175 = vmin.f32 %v2174, %v1965
    %v2176 = vmin.f32 %v2175, %v1967
    %v2177 = vmin.f32 %v2176, %v1969
    %v2178 = vmin.f32 %v2177, %v1971
    %v2179 = vmin.f32 %v2178, %v1973
    %v2180 = vmin.f32 %v2179, %v1975
    %v2181 = vrot.slane %v2180, 4
    %v2182 = vmin.f32 %v2180, %v2181
    %v2183 = vrot.slane %v2182, 2
    %v2184 = vmin.f32 %v2182, %v2183
    %v2185 = vrot.slane %v2184, 1
    %v2186 = vmin.f32 %v2184, %v2185
    %v2187 = vmin.f32 %v1956, %v1958
    %v2188 = vmin.f32 %v2187, %v1960
    %v2189 = vmin.f32 %v2188, %v1962
    %v2190 = vmin.f32 %v2189, %v1964
    %v2191 = vmin.f32 %v2190, %v1966
    %v2192 = vmin.f32 %v2191, %v1968
    %v2193 = vmin.f32 %v2192, %v1970
    %v2194 = vmin.f32 %v2193, %v1972
    %v2195 = vmin.f32 %v2194, %v1974
    %v2196 = vmin.f32 %v2195, %v1976
    %v2197 = vrot.slane %v2196, 4
    %v2198 = vmin.f32 %v2196, %v2197
    %v2199 = vrot.slane %v2198, 2
    %v2200 = vmin.f32 %v2198, %v2199
    %v2201 = vrot.slane %v2200, 1
    %v2202 = vmin.f32 %v2200, %v2201
    %v2203 = vmin.f32 %v1977, %v1979
    %v2204 = vmin.f32 %v2203, %v1981
    %v2205 = vmin.f32 %v2204, %v1983
    %v2206 = vmin.f32 %v2205, %v1985
    %v2207 = vmin.f32 %v2206, %v1987
    %v2208 = vmin.f32 %v2207, %v1989
    %v2209 = vmin.f32 %v2208, %v1991
    %v2210 = vmin.f32 %v2209, %v1993
    %v2211 = vmin.f32 %v2210, %v1995
    %v2212 = vmin.f32 %v2211, %v1997
    %v2213 = vrot.slane %v2212, 4
    %v2214 = vmin.f32 %v2212, %v2213
    %v2215 = vrot.slane %v2214, 2
    %v2216 = vmin.f32 %v2214, %v2215
    %v2217 = vrot.slane %v2216, 1
    %v2218 = vmin.f32 %v2216, %v2217
    %v2219 = vmin.f32 %v1978, %v1980
    %v2220 = vmin.f32 %v2219, %v1982
    %v2221 = vmin.f32 %v2220, %v1984
    %v2222 = vmin.f32 %v2221, %v1986
    %v2223 = vmin.f32 %v2222, %v1988
    %v2224 = vmin.f32 %v2223, %v1990
    %v2225 = vmin.f32 %v2224, %v1992
    %v2226 = vmin.f32 %v2225, %v1994
    %v2227 = vmin.f32 %v2226, %v1996
    %v2228 = vmin.f32 %v2227, %v1998
    %v2229 = vrot.slane %v2228, 4
    %v2230 = vmin.f32 %v2228, %v2229
    %v2231 = vrot.slane %v2230, 2
    %v2232 = vmin.f32 %v2230, %v2231
    %v2233 = vrot.slane %v2232, 1
    %v2234 = vmin.f32 %v2232, %v2233
    %v2235 = vmin.f32 %v1999, %v2001
    %v2236 = vmin.f32 %v2235, %v2003
    %v2237 = vmin.f32 %v2236, %v2005
    %v2238 = vmin.f32 %v2237, %v2007
    %v2239 = vmin.f32 %v2238, %v2009
    %v2240 = vmin.f32 %v2239, %v2011
    %v2241 = vmin.f32 %v2240, %v2013
    %v2242 = vmin.f32 %v2241, %v2015
    %v2243 = vmin.f32 %v2242, %v2017
    %v2244 = vmin.f32 %v2243, %v2019
    %v2245 = vrot.slane %v2244, 4
    %v2246 = vmin.f32 %v2244, %v2245
    %v2247 = vrot.slane %v2246, 2
    %v2248 = vmin.f32 %v2246, %v2247
    %v2249 = vrot.slane %v2248, 1
    %v2250 = vmin.f32 %v2248, %v2249
    %v2251 = vmin.f32 %v2000, %v2002
    %v2252 = vmin.f32 %v2251, %v2004
    %v2253 = vmin.f32 %v2252, %v2006
    %v2254 = vmin.f32 %v2253, %v2008
    %v2255 = vmin.f32 %v2254, %v2010
    %v2256 = vmin.f32 %v2255, %v2012
    %v2257 = vmin.f32 %v2256, %v2014
    %v2258 = vmin.f32 %v2257, %v2016
    %v2259 = vmin.f32 %v2258, %v2018
    %v2260 = vmin.f32 %v2259, %v2020
    %v2261 = vrot.slane %v2260, 4
    %v2262 = vmin.f32 %v2260, %v2261
    %v2263 = vrot.slane %v2262, 2
    %v2264 = vmin.f32 %v2262, %v2263
    %v2265 = vrot.slane %v2264, 1
    %v2266 = vmin.f32 %v2264, %v2265
    %v2267 = vmin.f32 %v2021, %v2023
    %v2268 = vmin.f32 %v2267, %v2025
    %v2269 = vmin.f32 %v2268, %v2027
    %v2270 = vmin.f32 %v2269, %v2029
    %v2271 = vmin.f32 %v2270, %v2031
    %v2272 = vmin.f32 %v2271, %v2033
    %v2273 = vmin.f32 %v2272, %v2035
    %v2274 = vmin.f32 %v2273, %v2037
    %v2275 = vmin.f32 %v2274, %v2039
    %v2276 = vmin.f32 %v2275, %v2041
    %v2277 = vrot.slane %v2276, 4
    %v2278 = vmin.f32 %v2276, %v2277
    %v2279 = vrot.slane %v2278, 2
    %v2280 = vmin.f32 %v2278, %v2279
    %v2281 = vrot.slane %v2280, 1
    %v2282 = vmin.f32 %v2280, %v2281
    %v2283 = vmin.f32 %v2022, %v2024
    %v2284 = vmin.f32 %v2283, %v2026
    %v2285 = vmin.f32 %v2284, %v2028
    %v2286 = vmin.f32 %v2285, %v2030
    %v2287 = vmin.f32 %v2286, %v2032
    %v2288 = vmin.f32 %v2287, %v2034
    %v2289 = vmin.f32 %v2288, %v2036
    %v2290 = vmin.f32 %v2289, %v2038
    %v2291 = vmin.f32 %v2290, %v2040
    %v2292 = vmin.f32 %v2291, %v2042
    %v2293 = vrot.slane %v2292, 4
    %v2294 = vmin.f32 %v2292, %v2293
    %v2295 = vrot.slane %v2294, 2
    %v2296 = vmin.f32 %v2294, %v2295
    %v2297 = vrot.slane %v2296, 1
    %v2298 = vmin.f32 %v2296, %v2297
    %v2299 = vrsqrt.pop %v2058
    %v2300 = vmul.f32 %v2058, %v2299
    %vm2301 = vcmp.eq.f32.partialorder %v2058, inf
    %v2302 = vsel %vm2301, %v2058, %v2300
    %vm2303 = vcmp.eq.f32.partialorder %v2058, 0.0
    %v2304 = vand.u32 %v2058, 2147483648
    %v2305 = vsel %vm2303, %v2304, %v2302
    %v2306 = vrsqrt.pop %v2074
    %v2307 = vmul.f32 %v2074, %v2306
    %vm2308 = vcmp.eq.f32.partialorder %v2074, inf
    %v2309 = vsel %vm2308, %v2074, %v2307
    %vm2310 = vcmp.eq.f32.partialorder %v2074, 0.0
    %v2311 = vand.u32 %v2074, 2147483648
    %v2312 = vsel %vm2310, %v2311, %v2309
    %v2313 = vrsqrt.pop %v2090
    %v2314 = vmul.f32 %v2090, %v2313
    %vm2315 = vcmp.eq.f32.partialorder %v2090, inf
    %v2316 = vsel %vm2315, %v2090, %v2314
    %vm2317 = vcmp.eq.f32.partialorder %v2090, 0.0
    %v2318 = vand.u32 %v2090, 2147483648
    %v2319 = vsel %vm2317, %v2318, %v2316
    %v2320 = vrsqrt.pop %v2106
    %v2321 = vmul.f32 %v2106, %v2320
    %vm2322 = vcmp.eq.f32.partialorder %v2106, inf
    %v2323 = vsel %vm2322, %v2106, %v2321
    %vm2324 = vcmp.eq.f32.partialorder %v2106, 0.0
    %v2325 = vand.u32 %v2106, 2147483648
    %v2326 = vsel %vm2324, %v2325, %v2323
    %v2327 = vrsqrt.pop %v2122
    %v2328 = vmul.f32 %v2122, %v2327
    %vm2329 = vcmp.eq.f32.partialorder %v2122, inf
    %v2330 = vsel %vm2329, %v2122, %v2328
    %vm2331 = vcmp.eq.f32.partialorder %v2122, 0.0
    %v2332 = vand.u32 %v2122, 2147483648
    %v2333 = vsel %vm2331, %v2332, %v2330
    %v2334 = vrsqrt.pop %v2138
    %v2335 = vmul.f32 %v2138, %v2334
    %vm2336 = vcmp.eq.f32.partialorder %v2138, inf
    %v2337 = vsel %vm2336, %v2138, %v2335
    %vm2338 = vcmp.eq.f32.partialorder %v2138, 0.0
    %v2339 = vand.u32 %v2138, 2147483648
    %v2340 = vsel %vm2338, %v2339, %v2337
    %v2341 = vrsqrt.pop %v2154
    %v2342 = vmul.f32 %v2154, %v2341
    %vm2343 = vcmp.eq.f32.partialorder %v2154, inf
    %v2344 = vsel %vm2343, %v2154, %v2342
    %vm2345 = vcmp.eq.f32.partialorder %v2154, 0.0
    %v2346 = vand.u32 %v2154, 2147483648
    %v2347 = vsel %vm2345, %v2346, %v2344
    %v2348 = vrsqrt.pop %v2170
    %v2349 = vmul.f32 %v2170, %v2348
    %vm2350 = vcmp.eq.f32.partialorder %v2170, inf
    %v2351 = vsel %vm2350, %v2170, %v2349
    %vm2352 = vcmp.eq.f32.partialorder %v2170, 0.0
    %v2353 = vand.u32 %v2170, 2147483648
    %v2354 = vsel %vm2352, %v2353, %v2351
    %v2355 = vrsqrt.pop %v2186
    %v2356 = vmul.f32 %v2186, %v2355
    %vm2357 = vcmp.eq.f32.partialorder %v2186, inf
    %v2358 = vsel %vm2357, %v2186, %v2356
    %vm2359 = vcmp.eq.f32.partialorder %v2186, 0.0
    %v2360 = vand.u32 %v2186, 2147483648
    %v2361 = vsel %vm2359, %v2360, %v2358
    %v2362 = vrsqrt.pop %v2202
    %v2363 = vmul.f32 %v2202, %v2362
    %vm2364 = vcmp.eq.f32.partialorder %v2202, inf
    %v2365 = vsel %vm2364, %v2202, %v2363
    %vm2366 = vcmp.eq.f32.partialorder %v2202, 0.0
    %v2367 = vand.u32 %v2202, 2147483648
    %v2368 = vsel %vm2366, %v2367, %v2365
    %v2369 = vrsqrt.pop %v2218
    %v2370 = vmul.f32 %v2218, %v2369
    %vm2371 = vcmp.eq.f32.partialorder %v2218, inf
    %v2372 = vsel %vm2371, %v2218, %v2370
    %vm2373 = vcmp.eq.f32.partialorder %v2218, 0.0
    %v2374 = vand.u32 %v2218, 2147483648
    %v2375 = vsel %vm2373, %v2374, %v2372
    %v2376 = vrsqrt.pop %v2234
    %v2377 = vmul.f32 %v2234, %v2376
    %vm2378 = vcmp.eq.f32.partialorder %v2234, inf
    %v2379 = vsel %vm2378, %v2234, %v2377
    %vm2380 = vcmp.eq.f32.partialorder %v2234, 0.0
    %v2381 = vand.u32 %v2234, 2147483648
    %v2382 = vsel %vm2380, %v2381, %v2379
    %v2383 = vrsqrt.pop %v2250
    %v2384 = vmul.f32 %v2250, %v2383
    %vm2385 = vcmp.eq.f32.partialorder %v2250, inf
    %v2386 = vsel %vm2385, %v2250, %v2384
    %vm2387 = vcmp.eq.f32.partialorder %v2250, 0.0
    %v2388 = vand.u32 %v2250, 2147483648
    %v2389 = vsel %vm2387, %v2388, %v2386
    %v2390 = vrsqrt.pop %v2266
    %v2391 = vmul.f32 %v2266, %v2390
    %vm2392 = vcmp.eq.f32.partialorder %v2266, inf
    %v2393 = vsel %vm2392, %v2266, %v2391
    %vm2394 = vcmp.eq.f32.partialorder %v2266, 0.0
    %v2395 = vand.u32 %v2266, 2147483648
    %v2396 = vsel %vm2394, %v2395, %v2393
    %v2397 = vrsqrt.pop %v2282
    %v2398 = vmul.f32 %v2282, %v2397
    %vm2399 = vcmp.eq.f32.partialorder %v2282, inf
    %v2400 = vsel %vm2399, %v2282, %v2398
    %vm2401 = vcmp.eq.f32.partialorder %v2282, 0.0
    %v2402 = vand.u32 %v2282, 2147483648
    %v2403 = vsel %vm2401, %v2402, %v2400
    %v2404 = vrsqrt.pop %v2298
    %v2405 = vmul.f32 %v2298, %v2404
    %vm2406 = vcmp.eq.f32.partialorder %v2298, inf
    %v2407 = vsel %vm2406, %v2298, %v2405
    %vm2408 = vcmp.eq.f32.partialorder %v2298, 0.0
    %v2409 = vand.u32 %v2298, 2147483648
    %v2410 = vsel %vm2408, %v2409, %v2407
    %v2419 = vlaneseq
    %v2420 = vshrl.u32 %v2419, 7
    %v2421 = vsub.s32 0, %v2420
    %v2422 = vrot.slane %v979, %v2421
    %v2423 = vlaneseq
    %v2424 = vshrl.u32 %v2423, 7
    %v2425 = vsub.s32 1, %v2424
    %v2426 = vrot.slane %v979, %v2425
    %v2427 = vlaneseq
    %v2428 = vshrl.u32 %v2427, 7
    %v2429 = vsub.s32 0, %v2428
    %v2430 = vrot.slane %v980, %v2429
    %v2431 = vlaneseq
    %v2432 = vshrl.u32 %v2431, 7
    %v2433 = vsub.s32 1, %v2432
    %v2434 = vrot.slane %v980, %v2433
    %v2435 = vlaneseq
    %v2436 = vshrl.u32 %v2435, 7
    %v2437 = vsub.s32 0, %v2436
    %v2438 = vrot.slane %v981, %v2437
    %v2439 = vlaneseq
    %v2440 = vshrl.u32 %v2439, 7
    %v2441 = vsub.s32 1, %v2440
    %v2442 = vrot.slane %v981, %v2441
    %v2443 = vlaneseq
    %v2444 = vshrl.u32 %v2443, 7
    %v2445 = vsub.s32 0, %v2444
    %v2446 = vrot.slane %v982, %v2445
    %v2447 = vlaneseq
    %v2448 = vshrl.u32 %v2447, 7
    %v2449 = vsub.s32 1, %v2448
    %v2450 = vrot.slane %v982, %v2449
    %v2451 = vlaneseq
    %v2452 = vshrl.u32 %v2451, 7
    %v2453 = vsub.s32 0, %v2452
    %v2454 = vrot.slane %v983, %v2453
    %v2455 = vlaneseq
    %v2456 = vshrl.u32 %v2455, 7
    %v2457 = vsub.s32 1, %v2456
    %v2458 = vrot.slane %v983, %v2457
    %v2459 = vlaneseq
    %v2460 = vshrl.u32 %v2459, 7
    %v2461 = vsub.s32 0, %v2460
    %v2462 = vrot.slane %v984, %v2461
    %v2463 = vlaneseq
    %v2464 = vshrl.u32 %v2463, 7
    %v2465 = vsub.s32 1, %v2464
    %v2466 = vrot.slane %v984, %v2465
    %v2467 = vlaneseq
    %v2468 = vshrl.u32 %v2467, 7
    %v2469 = vsub.s32 0, %v2468
    %v2470 = vrot.slane %v985, %v2469
    %v2471 = vlaneseq
    %v2472 = vshrl.u32 %v2471, 7
    %v2473 = vsub.s32 1, %v2472
    %v2474 = vrot.slane %v985, %v2473
    %v2475 = vlaneseq
    %v2476 = vshrl.u32 %v2475, 7
    %v2477 = vsub.s32 0, %v2476
    %v2478 = vrot.slane %v986, %v2477
    %v2479 = vlaneseq
    %v2480 = vshrl.u32 %v2479, 7
    %v2481 = vsub.s32 1, %v2480
    %v2482 = vrot.slane %v986, %v2481
    %v2499 = vmul.f32 %v2305, %v2422
    %v2500 = vmul.f32 %v2312, %v2426
    %v2501 = vmul.f32 %v2319, %v2430
    %v2502 = vmul.f32 %v2326, %v2434
    %v2503 = vmul.f32 %v2333, %v2438
    %v2504 = vmul.f32 %v2340, %v2442
    %v2505 = vmul.f32 %v2347, %v2446
    %v2506 = vmul.f32 %v2354, %v2450
    %v2507 = vmul.f32 %v2361, %v2454
    %v2508 = vmul.f32 %v2368, %v2458
    %v2509 = vmul.f32 %v2375, %v2462
    %v2510 = vmul.f32 %v2382, %v2466
    %v2511 = vmul.f32 %v2389, %v2470
    %v2512 = vmul.f32 %v2396, %v2474
    %v2513 = vmul.f32 %v2403, %v2478
    %v2514 = vmul.f32 %v2410, %v2482
    %vm2515 = vcmask 1040384
    %v2516 = vsel %vm2515, %v2499, 0.0
    %v2517 = vsel %vm2515, %v2501, 0.0
    %v2518 = vadd.f32 %v2516, %v2517
    %v2519 = vsel %vm2515, %v2503, 0.0
    %v2520 = vadd.f32 %v2518, %v2519
    %v2521 = vsel %vm2515, %v2505, 0.0
    %v2522 = vadd.f32 %v2520, %v2521
    %v2523 = vsel %vm2515, %v2507, 0.0
    %v2524 = vadd.f32 %v2522, %v2523
    %v2525 = vsel %vm2515, %v2509, 0.0
    %v2526 = vadd.f32 %v2524, %v2525
    %v2527 = vsel %vm2515, %v2511, 0.0
    %v2528 = vadd.f32 %v2526, %v2527
    %v2529 = vsel %vm2515, %v2513, 0.0
    %v2530 = vadd.f32 %v2528, %v2529
    %v2531 = vsel %vm2515, %v2500, 0.0
    %v2532 = vsel %vm2515, %v2502, 0.0
    %v2533 = vadd.f32 %v2531, %v2532
    %v2534 = vsel %vm2515, %v2504, 0.0
    %v2535 = vadd.f32 %v2533, %v2534
    %v2536 = vsel %vm2515, %v2506, 0.0
    %v2537 = vadd.f32 %v2535, %v2536
    %v2538 = vsel %vm2515, %v2508, 0.0
    %v2539 = vadd.f32 %v2537, %v2538
    %v2540 = vsel %vm2515, %v2510, 0.0
    %v2541 = vadd.f32 %v2539, %v2540
    %v2542 = vsel %vm2515, %v2512, 0.0
    %v2543 = vadd.f32 %v2541, %v2542
    %v2544 = vsel %vm2515, %v2514, 0.0
    %v2545 = vadd.f32 %v2543, %v2544
    %v2548 = vcombine.low %v2530, %v2545
    %v2550 = vunpack.c.l.s4 1966171168
    %v2551 = vunpack.c.0.s8 %v2550
    %v2552 = vlaneseq
    %v2553 = vshrl.u32 %v2552, 7
    %v2554 = vsub.s32 %v2551, %v2553
    %v2555 = vrot.slane %v2548, %v2554
    %v2557 = vunpack.c.l.s4 1966171168
    %v2558 = vunpack.c.0.s8 %v2557
    %v2559 = vlaneseq
    %v2560 = vshrl.u32 %v2559, 7
    %v2561 = vsub.s32 %v2558, %v2560
    %v2562 = vrot.slane %v2555, %v2561
    %v2564 = vlaneseq
    %vm2565 = vcmp.ge.s32.totalorder %v2564, 0
    %vm2566 = vcmp.lt.s32.totalorder %v2564, 256
    %vm2567 = vmand %vm2565, %vm2566
    %2568 = vst.msk [vmem:[#allocation7] sm:$0x3] %vm2567, %v2562
    // Predicated region
    $region18: #{_bezier_pallas.1} parent=1 // pred_check
      _
    $region19: #{_bezier_pallas.1} parent=1 // pred_check_branch
      %2570 = sbr.rel (0) target = $region21
    $region20: #{_bezier_pallas.1} parent=1 // pred_region
      %s2572 = ssub.s32 32, 32
      %2573 = vsyncadd [#allocation4], %s2572
      %s2575 = sshll.u32 [#allocation7], 4
      %s2576 = int_to_ptr.vmem [resolvable:$true] %s2575
      %2578 = dma.vmem_to_hbm [thread:$0]  %s2576, 32, %s2, [#allocation4]
    $region21: #{_bezier_pallas.1} parent=1 // pred_fallthru
      _
    // Predicated region
    $region22: #{_bezier_pallas.1} parent=1 // pred_check
      _
    $region23: #{_bezier_pallas.1} parent=1 // pred_check_branch
      %2580 = sbr.rel (0) target = $region25
    $region24: #{_bezier_pallas.1} parent=1 // pred_region
      %2581 = dma.done [#allocation4], 32
    $region25: #{_bezier_pallas.1} parent=1 // pred_fallthru
      _
    %2582 = vsyncpa [#allocation3], 1
    %2583 = vsyncpa [#allocation6], 1
    %2584 = vsyncpa [#allocation4], 1

</llo_original>
